<compile_context>
chip_gen: v7x
topology: tpu7x:2x2x1
jax: 0.10.0
libtpu: 0.0.40
codegen_flags: <defaults>
</compile_context>

<pallas_src>
import functools

import jax
import jax.numpy as jnp
from jax import lax
from jax.experimental import pallas as pl
from jax.experimental.pallas import tpu as pltpu

EPS = 1e-5
LANE = 128            # TPU vreg lane width
_MiB = 1024 * 1024


def _round_up(x, m):
    return (x + m - 1) // m * m


def _tpu_vmem_bytes():
    try:
        return int(pltpu.get_tpu_info().vmem_capacity_bytes)
    except Exception:
        return 64 * _MiB          # conservative (v7x-sized) fallback


def _vmem_limit(blocks, vmem_cap):
    """Scoped-VMEM budget for the chosen tiles (double-buffered) + headroom."""
    need = 4 * _MiB
    for shape, dtype in blocks:
        n = 1
        for d in shape:
            n *= int(d)
        need += 2 * n * jnp.dtype(dtype).itemsize      # 2x: double buffering
    return int(min(int(0.85 * vmem_cap), max(16 * _MiB, need)))


def _pick_tile(m, cap_rows):
    """8-aligned M tile <= cap_rows that keeps round_up(M, tile) padding small."""
    m8 = _round_up(m, 8)
    if m8 <= cap_rows:
        return m8
    ntiles = -(-m8 // cap_rows)                 # ceil
    return _round_up(-(-m8 // ntiles), 8)


def _group_tile(mp, tile_m, cap_rows):
    """Larger row tile for pure elementwise passes that still divides mp."""
    ntiles = mp // tile_m
    for d in range(ntiles, 0, -1):
        if ntiles % d == 0 and d * tile_m <= cap_rows:
            return d * tile_m
    return tile_m


# ---------------------------------------------------------------------------
# Pallas kernels
# ---------------------------------------------------------------------------
def _conv_stats_kernel(p_ref, w_ref, y_ref, stats_ref):
    """y = p @ w (bf16 in, f32 accumulate), store y (bf16) + per-tile stats.

    stats_ref is a per-tile (8, Cp) block (grid-indexed, store-only): row 0 =
    sum(y), row 1 = sum(y*y) over this tile's rows; remaining rows zero.  The
    tiny per-tile array is reduced in JAX, so the grid axis stays "parallel"
    (megacore-shardable on v7x).
    """
    y = jnp.dot(p_ref[...], w_ref[...], preferred_element_type=jnp.float32)
    y_ref[...] = y.astype(y_ref.dtype)
    stats_ref[...] = jnp.zeros_like(stats_ref)
    stats_ref[0:1, :] = jnp.sum(y, axis=0, keepdims=True)
    stats_ref[1:2, :] = jnp.sum(y * y, axis=0, keepdims=True)


def _conv2_shortcut_kernel(p2_ref, xe_ref, w2_ref, we_ref,
                           y2_ref, st2_ref, ste_ref):
    """conv2 matmul (+stats) fused with the 1x1-shortcut stats.

    ye = xe @ we is NOT written to HBM: only its per-tile statistics are
    emitted here; ye is recomputed in the final BN+add+ReLU pass (cheap: K is
    only Cin, and that matmul is memory-bound anyway).
    """
    y2 = jnp.dot(p2_ref[...], w2_ref[...], preferred_element_type=jnp.float32)
    ye = jnp.dot(xe_ref[...], we_ref[...], preferred_element_type=jnp.float32)
    y2_ref[...] = y2.astype(y2_ref.dtype)
    st2_ref[...] = jnp.zeros_like(st2_ref)
    st2_ref[0:1, :] = jnp.sum(y2, axis=0, keepdims=True)
    st2_ref[1:2, :] = jnp.sum(y2 * y2, axis=0, keepdims=True)
    ste_ref[...] = jnp.zeros_like(ste_ref)
    ste_ref[0:1, :] = jnp.sum(ye, axis=0, keepdims=True)
    ste_ref[1:2, :] = jnp.sum(ye * ye, axis=0, keepdims=True)


def _bn_relu_kernel(y_ref, scale_ref, shift_ref, o_ref):
    # BN (scale/shift precomputed from global stats) + ReLU, tiled over M.
    y = y_ref[...].astype(jnp.float32)
    o_ref[...] = jnp.maximum(y * scale_ref[...] + shift_ref[...],
                             0.0).astype(o_ref.dtype)


def _bn_add_relu_kernel(y2_ref, xe_ref, we_ref, s2_ref, se_ref, shift_ref,
                        o_ref):
    # main-path BN + (recomputed) shortcut conv + shortcut BN + add + ReLU.
    ye = jnp.dot(xe_ref[...], we_ref[...], preferred_element_type=jnp.float32)
    y2 = y2_ref[...].astype(jnp.float32)
    o_ref[...] = jnp.maximum(
        y2 * s2_ref[...] + ye * se_ref[...] + shift_ref[...], 0.0)


# ---------------------------------------------------------------------------
# pallas_call plumbing
# ---------------------------------------------------------------------------
def _matmul_with_stats(patches, weights, tile_m, out_dtype, vmem_cap):
    mp, kp = patches.shape
    _, cp = weights.shape
    ntiles = mp // tile_m
    limit = _vmem_limit([((tile_m, kp), patches.dtype),
                         ((kp, cp), weights.dtype),
                         ((tile_m, cp), out_dtype),
                         ((8, cp), jnp.float32)], vmem_cap)
    y, stats = pl.pallas_call(
        _conv_stats_kernel,
        grid=(ntiles,),
        in_specs=[
            pl.BlockSpec((tile_m, kp), lambda i: (i, 0)),
            pl.BlockSpec((kp, cp), lambda i: (0, 0)),        # weights resident
        ],
        out_specs=(
            pl.BlockSpec((tile_m, cp), lambda i: (i, 0)),
            pl.BlockSpec((8, cp), lambda i: (i, 0)),          # per-tile stats
        ),
        out_shape=(
            jax.ShapeDtypeStruct((mp, cp), out_dtype),
            jax.ShapeDtypeStruct((ntiles * 8, cp), jnp.float32),
        ),
        compiler_params=pltpu.CompilerParams(
            dimension_semantics=("parallel",),
            vmem_limit_bytes=limit),
    )(patches, weights)
    return y, stats


def _conv2_plus_shortcut(p2, xe, w2, we, tile_m, out_dtype, vmem_cap):
    mp, kp2 = p2.shape
    _, kpe = xe.shape
    _, cp = w2.shape
    ntiles = mp // tile_m
    limit = _vmem_limit([((tile_m, kp2), p2.dtype),
                         ((tile_m, kpe), xe.dtype),
                         ((kp2, cp), w2.dtype),
                         ((kpe, cp), we.dtype),
                         ((tile_m, cp), out_dtype),
                         ((8, cp), jnp.float32),
                         ((8, cp), jnp.float32)], vmem_cap)
    y2, st2, ste = pl.pallas_call(
        _conv2_shortcut_kernel,
        grid=(ntiles,),
        in_specs=[
            pl.BlockSpec((tile_m, kp2), lambda i: (i, 0)),
            pl.BlockSpec((tile_m, kpe), lambda i: (i, 0)),
            pl.BlockSpec((kp2, cp), lambda i: (0, 0)),
            pl.BlockSpec((kpe, cp), lambda i: (0, 0)),
        ],
        out_specs=(
            pl.BlockSpec((tile_m, cp), lambda i: (i, 0)),
            pl.BlockSpec((8, cp), lambda i: (i, 0)),
            pl.BlockSpec((8, cp), lambda i: (i, 0)),
        ),
        out_shape=(
            jax.ShapeDtypeStruct((mp, cp), out_dtype),
            jax.ShapeDtypeStruct((ntiles * 8, cp), jnp.float32),
            jax.ShapeDtypeStruct((ntiles * 8, cp), jnp.float32),
        ),
        compiler_params=pltpu.CompilerParams(
            dimension_semantics=("parallel",),
            vmem_limit_bytes=limit),
    )(p2, xe, w2, we)
    return y2, st2, ste


def _bn_relu(y, scale, shift, tile_m, out_dtype, vmem_cap):
    mp, cp = y.shape
    limit = _vmem_limit([((tile_m, cp), y.dtype),
                         ((tile_m, cp), out_dtype),
                         ((1, cp), jnp.float32),
                         ((1, cp), jnp.float32)], vmem_cap)
    return pl.pallas_call(
        _bn_relu_kernel,
        grid=(mp // tile_m,),
        in_specs=[
            pl.BlockSpec((tile_m, cp), lambda i: (i, 0)),
            pl.BlockSpec((1, cp), lambda i: (0, 0)),
            pl.BlockSpec((1, cp), lambda i: (0, 0)),
        ],
        out_specs=pl.BlockSpec((tile_m, cp), lambda i: (i, 0)),
        out_shape=jax.ShapeDtypeStruct((mp, cp), out_dtype),
        compiler_params=pltpu.CompilerParams(
            dimension_semantics=("parallel",),
            vmem_limit_bytes=limit),
    )(y, scale, shift)


def _bn_add_relu(y2, xe, we, s2, se, shift, tile_m, vmem_cap):
    mp, cp = y2.shape
    _, kpe = xe.shape
    limit = _vmem_limit([((tile_m, cp), y2.dtype),
                         ((tile_m, kpe), xe.dtype),
                         ((kpe, cp), we.dtype),
                         ((tile_m, cp), jnp.float32),
                         ((1, cp), jnp.float32),
                         ((1, cp), jnp.float32),
                         ((1, cp), jnp.float32)], vmem_cap)
    return pl.pallas_call(
        _bn_add_relu_kernel,
        grid=(mp // tile_m,),
        in_specs=[
            pl.BlockSpec((tile_m, cp), lambda i: (i, 0)),
            pl.BlockSpec((tile_m, kpe), lambda i: (i, 0)),
            pl.BlockSpec((kpe, cp), lambda i: (0, 0)),
            pl.BlockSpec((1, cp), lambda i: (0, 0)),
            pl.BlockSpec((1, cp), lambda i: (0, 0)),
            pl.BlockSpec((1, cp), lambda i: (0, 0)),
        ],
        out_specs=pl.BlockSpec((tile_m, cp), lambda i: (i, 0)),
        out_shape=jax.ShapeDtypeStruct((mp, cp), jnp.float32),
        compiler_params=pltpu.CompilerParams(
            dimension_semantics=("parallel",),
            vmem_limit_bytes=limit),
    )(y2, xe, we, s2, se, shift)


# ---------------------------------------------------------------------------
# glue: im2col / padding / per-channel scale-shift (tiny tensors, plain JAX)
# ---------------------------------------------------------------------------
def _im2col(x_nhwc, ksize, stride, padding):
    n, h, w, c = x_nhwc.shape
    ho = (h + 2 * padding - ksize) // stride + 1
    wo = (w + 2 * padding - ksize) // stride + 1
    xp = jnp.pad(x_nhwc, ((0, 0), (padding, padding), (padding, padding), (0, 0)))
    cols = []
    for ky in range(ksize):
        for kx in range(ksize):
            patch = lax.slice(
                xp,
                (0, ky, kx, 0),
                (n, ky + (ho - 1) * stride + 1, kx + (wo - 1) * stride + 1, c),
                (1, stride, stride, 1))
            cols.append(patch)
    patches = jnp.concatenate(cols, axis=-1)                 # (ky, kx, cin) order
    return patches.reshape(n * ho * wo, ksize * ksize * c)


def _pad2(a, rows, cols):
    return jnp.pad(a, ((0, rows - a.shape[0]), (0, cols - a.shape[1])))


def _bn_scale_shift(stats, count, gamma_p, beta_p):
    # Reduce the per-tile (8, Cp) partials, then fold global mean / rsqrt(var)
    # (biased, train-mode) into per-channel scale/shift. All math in f32.
    cp = gamma_p.shape[0]
    st = stats.reshape(-1, 8, cp)
    mean = jnp.sum(st[:, 0, :], axis=0) / count
    var = jnp.maximum(jnp.sum(st[:, 1, :], axis=0) / count - mean * mean, 0.0)
    scale = gamma_p * lax.rsqrt(var + EPS)
    shift = beta_p - mean * scale
    return scale.reshape(1, cp), shift.reshape(1, cp)


# ---------------------------------------------------------------------------
# public wrapper
# ---------------------------------------------------------------------------
def restnet_down_block(x_nchw, params, stride, *, tile_m=None,
                       mxu_dtype=jnp.bfloat16):
    s0, s1 = stride
    # Cast once up front: im2col patches / shortcut operand are built in bf16.
    x = jnp.transpose(x_nchw, (0, 2, 3, 1)).astype(mxu_dtype)      # NHWC
    n, h, w, cin = x.shape
    cout = params["w1"].shape[0]
    cp = _round_up(cout, LANE)

    # Output spatial extents (conv1/shortcut share stride s0; conv2 uses s1).
    ho = (h + 2 - 3) // s0 + 1
    wo = (w + 2 - 3) // s0 + 1
    ho2 = (ho + 2 - 3) // s1 + 1
    wo2 = (wo + 2 - 3) // s1 + 1
    assert (ho2, wo2) == (ho, wo), (
        "residual add requires stride[1] == 1 so conv2 preserves the spatial "
        f"extent; got {(ho2, wo2)} vs {(ho, wo)}")
    m = n * ho * wo

    # Generation-aware tiling: 128 MiB VMEM (v5e/v6e) -> bigger tiles; 64 MiB
    # (v7x) -> conservative tiles. Elementwise passes carry no weights, so they
    # get an independent, larger row tile.
    vmem_cap = _tpu_vmem_bytes()
    big_vmem = vmem_cap >= 96 * _MiB
    mm_cap_rows = 1024 if big_vmem else 512
    elem_cap_rows = 4096 if big_vmem else 2048

    if tile_m is None:
        tile_m = _pick_tile(m, mm_cap_rows)
    mp = _round_up(m, tile_m)
    tile_e = _group_tile(mp, tile_m, elem_cap_rows)

    def pad_gb(v):
        return jnp.pad(v, (0, cp - cout)).astype(jnp.float32)

    # --- conv1 (3x3, stride s0, pad 1) + bn1 + relu ------------------------
    k1 = 9 * cin
    kp1 = _round_up(k1, LANE)
    w1 = jnp.transpose(params["w1"], (2, 3, 1, 0)).reshape(k1, cout)
    p1p = _pad2(_im2col(x, 3, s0, 1), mp, kp1)                       # bf16
    w1p = _pad2(w1, kp1, cp).astype(mxu_dtype)
    # conv bias dropped: absorbed exactly by train-mode BN mean subtraction.
    y1, st1 = _matmul_with_stats(p1p, w1p, tile_m, mxu_dtype, vmem_cap)
    sc1, sh1 = _bn_scale_shift(st1, float(m), pad_gb(params["g1"]),
                               pad_gb(params["bt1"]))
    t1 = _bn_relu(y1, sc1, sh1, tile_e, mxu_dtype, vmem_cap)         # bf16
    t1_nhwc = t1[:m, :cout].reshape(n, ho, wo, cout)

    # --- conv2 (3x3, stride 1, pad 1) + bn2 stats, fused with the shortcut
    #     (1x1, stride s0) stats; ye itself is recomputed in the final pass.
    k2 = 9 * cout
    kp2 = _round_up(k2, LANE)
    w2 = jnp.transpose(params["w2"], (2, 3, 1, 0)).reshape(k2, cout)
    p2p = _pad2(_im2col(t1_nhwc, 3, s1, 1), mp, kp2)                 # bf16
    w2p = _pad2(w2, kp2, cp).astype(mxu_dtype)

    kpe = _round_up(cin, LANE)
    we = jnp.transpose(params["we"], (2, 3, 1, 0)).reshape(cin, cout)
    xep = _pad2(x[:, ::s0, ::s0, :].reshape(m, cin), mp, kpe)        # bf16
    wep = _pad2(we, kpe, cp).astype(mxu_dtype)

    y2, st2, ste = _conv2_plus_shortcut(p2p, xep, w2p, wep, tile_m,
                                        mxu_dtype, vmem_cap)
    sc2, sh2 = _bn_scale_shift(st2, float(m), pad_gb(params["g2"]),
                               pad_gb(params["bt2"]))
    sce, she = _bn_scale_shift(ste, float(m), pad_gb(params["ge"]),
                               pad_gb(params["bte"]))

    # --- fused: main BN + recomputed shortcut conv + shortcut BN + add + relu
    out = _bn_add_relu(y2, xep, wep, sc2, sce, sh2 + she, tile_e, vmem_cap)
    out_nhwc = out[:m, :cout].reshape(n, ho2, wo2, cout)
    return jnp.transpose(out_nhwc, (0, 3, 1, 2)).astype(x_nchw.dtype)


# ---------------------------------------------------------------------------
# pure-JAX reference (same semantics as the PyTorch forward in train mode)
# ---------------------------------------------------------------------------
def _reference(x_nchw, params, stride):
    def conv(x, w, b, s, p):
        y = lax.conv_general_dilated(x, w, (s, s), [(p, p), (p, p)],
                                     dimension_numbers=("NCHW", "OIHW", "NCHW"))
        return y + b[None, :, None, None]

    def bn(x, g, bt):
        m = jnp.mean(x, axis=(0, 2, 3), keepdims=True)
        v = jnp.var(x, axis=(0, 2, 3), keepdims=True)            # biased
        return (x - m) / jnp.sqrt(v + EPS) * g[None, :, None, None] \
            + bt[None, :, None, None]

    s0, s1 = stride
    extra = bn(conv(x_nchw, params["we"], params["be"], s0, 0),
               params["ge"], params["bte"])
    out = jax.nn.relu(bn(conv(x_nchw, params["w1"], params["b1"], s0, 1),
                         params["g1"], params["bt1"]))
    out = bn(conv(out, params["w2"], params["b2"], s1, 1),
             params["g2"], params["bt2"])
    return jax.nn.relu(extra + out)


if __name__ == "__main__":
    key = jax.random.PRNGKey(0)
    N, Cin, H, W = 2, 4, 16, 16
    Cout = 8
    stride = (2, 1)

    ks = jax.random.split(key, 13)
    params = {
        "w1": 0.1 * jax.random.normal(ks[0], (Cout, Cin, 3, 3), jnp.float32),
        "b1": 0.1 * jax.random.normal(ks[1], (Cout,), jnp.float32),
        "w2": 0.1 * jax.random.normal(ks[2], (Cout, Cout, 3, 3), jnp.float32),
        "b2": 0.1 * jax.random.normal(ks[3], (Cout,), jnp.float32),
        "we": 0.1 * jax.random.normal(ks[4], (Cout, Cin, 1, 1), jnp.float32),
        "be": 0.1 * jax.random.normal(ks[5], (Cout,), jnp.float32),
        "g1": 1.0 + 0.1 * jax.random.normal(ks[6], (Cout,), jnp.float32),
        "bt1": 0.1 * jax.random.normal(ks[7], (Cout,), jnp.float32),
        "g2": 1.0 + 0.1 * jax.random.normal(ks[8], (Cout,), jnp.float32),
        "bt2": 0.1 * jax.random.normal(ks[9], (Cout,), jnp.float32),
        "ge": 1.0 + 0.1 * jax.random.normal(ks[10], (Cout,), jnp.float32),
        "bte": 0.1 * jax.random.normal(ks[11], (Cout,), jnp.float32),
    }
    x = jax.random.normal(ks[12], (N, Cin, H, W), jnp.float32)

    # tile_m=64 exercises the multi-tile (grid > 1) per-tile-stats path at this
    # small size; real shapes use the generation-aware auto tile.
    fwd = jax.jit(functools.partial(restnet_down_block, stride=stride, tile_m=64))
    out = jax.block_until_ready(fwd(x, params))
    ref = _reference(x, params, stride)

    assert out.shape == ref.shape, (out.shape, ref.shape)
    err = float(jnp.max(jnp.abs(out - ref)))
    # bf16 MXU operands + bf16-stored intermediates (y1/y2/t1) vs an all-f32
    # reference; statistics themselves are accumulated in f32.
    assert err < 7.5e-2, f"max abs err {err}"
    print("KERNEL_OK")
</pallas_src>

<mosaic_0001>
module attributes {stable_mosaic.version = 11 : i64} {
  func.func @_conv_stats_kernel(%arg0: i32, %arg1: memref<64x128xbf16, #tpu.memory_space<vmem>>, %arg2: memref<128x128xbf16, #tpu.memory_space<vmem>>, %arg3: memref<64x128xbf16, #tpu.memory_space<vmem>>, %arg4: memref<8x128xf32, #tpu.memory_space<vmem>>) attributes {dimension_semantics = [#tpu.dimension_semantics<parallel>], iteration_bounds = array<i64: 2>, scalar_prefetch = 0 : i64, scratch_operands = 0 : i64, tpu.core_type = #tpu.core_type<tc>, window_params = [{transform_indices = @transform_0, window_bounds = array<i64: 64, 128>}, {pipeline_mode = #tpu.pipeline_mode<synchronous>, transform_indices = @transform_1, window_bounds = array<i64: 128, 128>}, {transform_indices = @transform_2, window_bounds = array<i64: 64, 128>}, {transform_indices = @transform_3, window_bounds = array<i64: 8, 128>}]} {
    %c0 = arith.constant 0 : index
    %c0_0 = arith.constant 0 : index
    %0 = vector.load %arg1[%c0, %c0_0] : memref<64x128xbf16, #tpu.memory_space<vmem>>, vector<64x128xbf16>
    %c0_1 = arith.constant 0 : index
    %c0_2 = arith.constant 0 : index
    %1 = vector.load %arg2[%c0_1, %c0_2] : memref<128x128xbf16, #tpu.memory_space<vmem>>, vector<128x128xbf16>
    %cst = arith.constant dense<0.000000e+00> : vector<64x128xf32>
    %2 = tpu.matmul %0, %1, %cst {dimension_numbers = #tpu.dot_dimension_numbers<[1], [0], [0], [1], [0, 0, 1, 1], [], []>} : vector<64x128xbf16>, vector<128x128xbf16>, vector<64x128xf32> -> vector<64x128xf32>
    %3 = arith.truncf %2 : vector<64x128xf32> to vector<64x128xbf16>
    %c0_3 = arith.constant 0 : index
    %c0_4 = arith.constant 0 : index
    %4 = vector.load %arg3[%c0_3, %c0_4] : memref<64x128xbf16, #tpu.memory_space<vmem>>, vector<64x128xbf16>
    tpu.vector_store %arg3[%c0_3, %c0_4], %3 {strides = array<i32>} : memref<64x128xbf16, #tpu.memory_space<vmem>>, vector<64x128xbf16>,
    %cst_5 = arith.constant 0.000000e+00 : f32
    %5 = vector.broadcast %cst_5 : f32 to vector<8x128xf32>
    %c0_6 = arith.constant 0 : index
    %c0_7 = arith.constant 0 : index
    %6 = vector.load %arg4[%c0_6, %c0_7] : memref<8x128xf32, #tpu.memory_space<vmem>>, vector<8x128xf32>
    tpu.vector_store %arg4[%c0_6, %c0_7], %5 {strides = array<i32>} : memref<8x128xf32, #tpu.memory_space<vmem>>, vector<8x128xf32>,
    %cst_8 = arith.constant dense<0.000000e+00> : vector<128xf32>
    %7 = vector.multi_reduction <add>, %2, %cst_8 [0] : vector<64x128xf32> to vector<128xf32>
    %8 = vector.shape_cast %7 : vector<128xf32> to vector<1x128xf32>
    %c0_9 = arith.constant 0 : index
    %c0_10 = arith.constant 0 : index
    %9 = vector.load %arg4[%c0_9, %c0_10] : memref<8x128xf32, #tpu.memory_space<vmem>>, vector<1x128xf32>
    tpu.vector_store %arg4[%c0_9, %c0_10], %8 {strides = array<i32>} : memref<8x128xf32, #tpu.memory_space<vmem>>, vector<1x128xf32>,
    %10 = arith.mulf %2, %2 : vector<64x128xf32>
    %cst_11 = arith.constant dense<0.000000e+00> : vector<128xf32>
    %11 = vector.multi_reduction <add>, %10, %cst_11 [0] : vector<64x128xf32> to vector<128xf32>
    %12 = vector.shape_cast %11 : vector<128xf32> to vector<1x128xf32>
    %c1 = arith.constant 1 : index
    %c0_12 = arith.constant 0 : index
    %13 = vector.load %arg4[%c1, %c0_12] : memref<8x128xf32, #tpu.memory_space<vmem>>, vector<1x128xf32>
    tpu.vector_store %arg4[%c1, %c0_12], %12 {strides = array<i32>} : memref<8x128xf32, #tpu.memory_space<vmem>>, vector<1x128xf32>,
    return
  }
  func.func @transform_0(%arg0: i32) -> (i32, i32) {
    %c0_i32 = arith.constant 0 : i32
    %c0_i32_0 = arith.constant 0 : i32
    return %arg0, %c0_i32 : i32, i32
  }
  func.func @transform_1(%arg0: i32) -> (i32, i32) {
    %c0_i32 = arith.constant 0 : i32
    %c0_i32_0 = arith.constant 0 : i32
    %c0_i32_1 = arith.constant 0 : i32
    return %c0_i32, %c0_i32_0 : i32, i32
  }
  func.func @transform_2(%arg0: i32) -> (i32, i32) {
    %c0_i32 = arith.constant 0 : i32
    %c0_i32_0 = arith.constant 0 : i32
    return %arg0, %c0_i32 : i32, i32
  }
  func.func @transform_3(%arg0: i32) -> (i32, i32) {
    %c0_i32 = arith.constant 0 : i32
    %c0_i32_0 = arith.constant 0 : i32
    return %arg0, %c0_i32 : i32, i32
  }
}

module attributes {stable_mosaic.version = 11 : i64} {
  func.func @_bn_relu_kernel(%arg0: i32, %arg1: memref<128x128xbf16, #tpu.memory_space<vmem>>, %arg2: memref<1x128xf32, #tpu.memory_space<vmem>>, %arg3: memref<1x128xf32, #tpu.memory_space<vmem>>, %arg4: memref<128x128xbf16, #tpu.memory_space<vmem>>) attributes {dimension_semantics = [#tpu.dimension_semantics<parallel>], iteration_bounds = array<i64: 1>, scalar_prefetch = 0 : i64, scratch_operands = 0 : i64, tpu.core_type = #tpu.core_type<tc>, window_params = [{transform_indices = @transform_0, window_bounds = array<i64: 128, 128>}, {pipeline_mode = #tpu.pipeline_mode<synchronous>, transform_indices = @transform_1, window_bounds = array<i64: 1, 128>}, {pipeline_mode = #tpu.pipeline_mode<synchronous>, transform_indices = @transform_2, window_bounds = array<i64: 1, 128>}, {transform_indices = @transform_3, window_bounds = array<i64: 128, 128>}]} {
    %c0 = arith.constant 0 : index
    %c0_0 = arith.constant 0 : index
    %0 = vector.load %arg1[%c0, %c0_0] : memref<128x128xbf16, #tpu.memory_space<vmem>>, vector<128x128xbf16>
    %1 = arith.extf %0 : vector<128x128xbf16> to vector<128x128xf32>
    %c0_1 = arith.constant 0 : index
    %c0_2 = arith.constant 0 : index
    %2 = vector.load %arg2[%c0_1, %c0_2] : memref<1x128xf32, #tpu.memory_space<vmem>>, vector<1x128xf32>
    %3 = vector.broadcast %2 : vector<1x128xf32> to vector<128x128xf32>
    %4 = arith.mulf %1, %3 : vector<128x128xf32>
    %c0_3 = arith.constant 0 : index
    %c0_4 = arith.constant 0 : index
    %5 = vector.load %arg3[%c0_3, %c0_4] : memref<1x128xf32, #tpu.memory_space<vmem>>, vector<1x128xf32>
    %6 = vector.broadcast %5 : vector<1x128xf32> to vector<128x128xf32>
    %7 = arith.addf %4, %6 : vector<128x128xf32>
    %cst = arith.constant 0.000000e+00 : f32
    %8 = vector.broadcast %cst : f32 to vector<128x128xf32>
    %9 = arith.maximumf %7, %8 : vector<128x128xf32>
    %10 = arith.truncf %9 : vector<128x128xf32> to vector<128x128xbf16>
    %c0_5 = arith.constant 0 : index
    %c0_6 = arith.constant 0 : index
    %11 = vector.load %arg4[%c0_5, %c0_6] : memref<128x128xbf16, #tpu.memory_space<vmem>>, vector<128x128xbf16>
    tpu.vector_store %arg4[%c0_5, %c0_6], %10 {strides = array<i32>} : memref<128x128xbf16, #tpu.memory_space<vmem>>, vector<128x128xbf16>,
    return
  }
  func.func @transform_0(%arg0: i32) -> (i32, i32) {
    %c0_i32 = arith.constant 0 : i32
    %c0_i32_0 = arith.constant 0 : i32
    return %arg0, %c0_i32 : i32, i32
  }
  func.func @transform_1(%arg0: i32) -> (i32, i32) {
    %c0_i32 = arith.constant 0 : i32
    %c0_i32_0 = arith.constant 0 : i32
    %c0_i32_1 = arith.constant 0 : i32
    return %c0_i32, %c0_i32_0 : i32, i32
  }
  func.func @transform_2(%arg0: i32) -> (i32, i32) {
    %c0_i32 = arith.constant 0 : i32
    %c0_i32_0 = arith.constant 0 : i32
    %c0_i32_1 = arith.constant 0 : i32
    return %c0_i32, %c0_i32_0 : i32, i32
  }
  func.func @transform_3(%arg0: i32) -> (i32, i32) {
    %c0_i32 = arith.constant 0 : i32
    %c0_i32_0 = arith.constant 0 : i32
    return %arg0, %c0_i32 : i32, i32
  }
}

module attributes {stable_mosaic.version = 11 : i64} {
  func.func @_conv2_shortcut_kernel(%arg0: i32, %arg1: memref<64x128xbf16, #tpu.memory_space<vmem>>, %arg2: memref<64x128xbf16, #tpu.memory_space<vmem>>, %arg3: memref<128x128xbf16, #tpu.memory_space<vmem>>, %arg4: memref<128x128xbf16, #tpu.memory_space<vmem>>, %arg5: memref<64x128xbf16, #tpu.memory_space<vmem>>, %arg6: memref<8x128xf32, #tpu.memory_space<vmem>>, %arg7: memref<8x128xf32, #tpu.memory_space<vmem>>) attributes {dimension_semantics = [#tpu.dimension_semantics<parallel>], iteration_bounds = array<i64: 2>, scalar_prefetch = 0 : i64, scratch_operands = 0 : i64, tpu.core_type = #tpu.core_type<tc>, window_params = [{transform_indices = @transform_0, window_bounds = array<i64: 64, 128>}, {transform_indices = @transform_1, window_bounds = array<i64: 64, 128>}, {pipeline_mode = #tpu.pipeline_mode<synchronous>, transform_indices = @transform_2, window_bounds = array<i64: 128, 128>}, {pipeline_mode = #tpu.pipeline_mode<synchronous>, transform_indices = @transform_3, window_bounds = array<i64: 128, 128>}, {transform_indices = @transform_4, window_bounds = array<i64: 64, 128>}, {transform_indices = @transform_5, window_bounds = array<i64: 8, 128>}, {transform_indices = @transform_6, window_bounds = array<i64: 8, 128>}]} {
    %c0 = arith.constant 0 : index
    %c0_0 = arith.constant 0 : index
    %0 = vector.load %arg1[%c0, %c0_0] : memref<64x128xbf16, #tpu.memory_space<vmem>>, vector<64x128xbf16>
    %c0_1 = arith.constant 0 : index
    %c0_2 = arith.constant 0 : index
    %1 = vector.load %arg3[%c0_1, %c0_2] : memref<128x128xbf16, #tpu.memory_space<vmem>>, vector<128x128xbf16>
    %cst = arith.constant dense<0.000000e+00> : vector<64x128xf32>
    %2 = tpu.matmul %0, %1, %cst {dimension_numbers = #tpu.dot_dimension_numbers<[1], [0], [0], [1], [0, 0, 1, 1], [], []>} : vector<64x128xbf16>, vector<128x128xbf16>, vector<64x128xf32> -> vector<64x128xf32>
    %c0_3 = arith.constant 0 : index
    %c0_4 = arith.constant 0 : index
    %3 = vector.load %arg2[%c0_3, %c0_4] : memref<64x128xbf16, #tpu.memory_space<vmem>>, vector<64x128xbf16>
    %c0_5 = arith.constant 0 : index
    %c0_6 = arith.constant 0 : index
    %4 = vector.load %arg4[%c0_5, %c0_6] : memref<128x128xbf16, #tpu.memory_space<vmem>>, vector<128x128xbf16>
    %cst_7 = arith.constant dense<0.000000e+00> : vector<64x128xf32>
    %5 = tpu.matmul %3, %4, %cst_7 {dimension_numbers = #tpu.dot_dimension_numbers<[1], [0], [0], [1], [0, 0, 1, 1], [], []>} : vector<64x128xbf16>, vector<128x128xbf16>, vector<64x128xf32> -> vector<64x128xf32>
    %6 = arith.truncf %2 : vector<64x128xf32> to vector<64x128xbf16>
    %c0_8 = arith.constant 0 : index
    %c0_9 = arith.constant 0 : index
    %7 = vector.load %arg5[%c0_8, %c0_9] : memref<64x128xbf16, #tpu.memory_space<vmem>>, vector<64x128xbf16>
    tpu.vector_store %arg5[%c0_8, %c0_9], %6 {strides = array<i32>} : memref<64x128xbf16, #tpu.memory_space<vmem>>, vector<64x128xbf16>,
    %cst_10 = arith.constant 0.000000e+00 : f32
    %8 = vector.broadcast %cst_10 : f32 to vector<8x128xf32>
    %c0_11 = arith.constant 0 : index
    %c0_12 = arith.constant 0 : index
    %9 = vector.load %arg6[%c0_11, %c0_12] : memref<8x128xf32, #tpu.memory_space<vmem>>, vector<8x128xf32>
    tpu.vector_store %arg6[%c0_11, %c0_12], %8 {strides = array<i32>} : memref<8x128xf32, #tpu.memory_space<vmem>>, vector<8x128xf32>,
    %cst_13 = arith.constant dense<0.000000e+00> : vector<128xf32>
    %10 = vector.multi_reduction <add>, %2, %cst_13 [0] : vector<64x128xf32> to vector<128xf32>
    %11 = vector.shape_cast %10 : vector<128xf32> to vector<1x128xf32>
    %c0_14 = arith.constant 0 : index
    %c0_15 = arith.constant 0 : index
    %12 = vector.load %arg6[%c0_14, %c0_15] : memref<8x128xf32, #tpu.memory_space<vmem>>, vector<1x128xf32>
    tpu.vector_store %arg6[%c0_14, %c0_15], %11 {strides = array<i32>} : memref<8x128xf32, #tpu.memory_space<vmem>>, vector<1x128xf32>,
    %13 = arith.mulf %2, %2 : vector<64x128xf32>
    %cst_16 = arith.constant dense<0.000000e+00> : vector<128xf32>
    %14 = vector.multi_reduction <add>, %13, %cst_16 [0] : vector<64x128xf32> to vector<128xf32>
    %15 = vector.shape_cast %14 : vector<128xf32> to vector<1x128xf32>
    %c1 = arith.constant 1 : index
    %c0_17 = arith.constant 0 : index
    %16 = vector.load %arg6[%c1, %c0_17] : memref<8x128xf32, #tpu.memory_space<vmem>>, vector<1x128xf32>
    tpu.vector_store %arg6[%c1, %c0_17], %15 {strides = array<i32>} : memref<8x128xf32, #tpu.memory_space<vmem>>, vector<1x128xf32>,
    %cst_18 = arith.constant 0.000000e+00 : f32
    %17 = vector.broadcast %cst_18 : f32 to vector<8x128xf32>
    %c0_19 = arith.constant 0 : index
    %c0_20 = arith.constant 0 : index
    %18 = vector.load %arg7[%c0_19, %c0_20] : memref<8x128xf32, #tpu.memory_space<vmem>>, vector<8x128xf32>
    tpu.vector_store %arg7[%c0_19, %c0_20], %17 {strides = array<i32>} : memref<8x128xf32, #tpu.memory_space<vmem>>, vector<8x128xf32>,
    %cst_21 = arith.constant dense<0.000000e+00> : vector<128xf32>
    %19 = vector.multi_reduction <add>, %5, %cst_21 [0] : vector<64x128xf32> to vector<128xf32>
    %20 = vector.shape_cast %19 : vector<128xf32> to vector<1x128xf32>
    %c0_22 = arith.constant 0 : index
    %c0_23 = arith.constant 0 : index
    %21 = vector.load %arg7[%c0_22, %c0_23] : memref<8x128xf32, #tpu.memory_space<vmem>>, vector<1x128xf32>
    tpu.vector_store %arg7[%c0_22, %c0_23], %20 {strides = array<i32>} : memref<8x128xf32, #tpu.memory_space<vmem>>, vector<1x128xf32>,
    %22 = arith.mulf %5, %5 : vector<64x128xf32>
    %cst_24 = arith.constant dense<0.000000e+00> : vector<128xf32>
    %23 = vector.multi_reduction <add>, %22, %cst_24 [0] : vector<64x128xf32> to vector<128xf32>
    %24 = vector.shape_cast %23 : vector<128xf32> to vector<1x128xf32>
    %c1_25 = arith.constant 1 : index
    %c0_26 = arith.constant 0 : index
    %25 = vector.load %arg7[%c1_25, %c0_26] : memref<8x128xf32, #tpu.memory_space<vmem>>, vector<1x128xf32>
    tpu.vector_store %arg7[%c1_25, %c0_26], %24 {strides = array<i32>} : memref<8x128xf32, #tpu.memory_space<vmem>>, vector<1x128xf32>,
    return
  }
  func.func @transform_0(%arg0: i32) -> (i32, i32) {
    %c0_i32 = arith.constant 0 : i32
    %c0_i32_0 = arith.constant 0 : i32
    return %arg0, %c0_i32 : i32, i32
  }
  func.func @transform_1(%arg0: i32) -> (i32, i32) {
    %c0_i32 = arith.constant 0 : i32
    %c0_i32_0 = arith.constant 0 : i32
    return %arg0, %c0_i32 : i32, i32
  }
  func.func @transform_2(%arg0: i32) -> (i32, i32) {
    %c0_i32 = arith.constant 0 : i32
    %c0_i32_0 = arith.constant 0 : i32
    %c0_i32_1 = arith.constant 0 : i32
    return %c0_i32, %c0_i32_0 : i32, i32
  }
  func.func @transform_3(%arg0: i32) -> (i32, i32) {
    %c0_i32 = arith.constant 0 : i32
    %c0_i32_0 = arith.constant 0 : i32
    %c0_i32_1 = arith.constant 0 : i32
    return %c0_i32, %c0_i32_0 : i32, i32
  }
  func.func @transform_4(%arg0: i32) -> (i32, i32) {
    %c0_i32 = arith.constant 0 : i32
    %c0_i32_0 = arith.constant 0 : i32
    return %arg0, %c0_i32 : i32, i32
  }
  func.func @transform_5(%arg0: i32) -> (i32, i32) {
    %c0_i32 = arith.constant 0 : i32
    %c0_i32_0 = arith.constant 0 : i32
    return %arg0, %c0_i32 : i32, i32
  }
  func.func @transform_6(%arg0: i32) -> (i32, i32) {
    %c0_i32 = arith.constant 0 : i32
    %c0_i32_0 = arith.constant 0 : i32
    return %arg0, %c0_i32 : i32, i32
  }
}

module attributes {stable_mosaic.version = 11 : i64} {
  func.func @_bn_add_relu_kernel(%arg0: i32, %arg1: memref<128x128xbf16, #tpu.memory_space<vmem>>, %arg2: memref<128x128xbf16, #tpu.memory_space<vmem>>, %arg3: memref<128x128xbf16, #tpu.memory_space<vmem>>, %arg4: memref<1x128xf32, #tpu.memory_space<vmem>>, %arg5: memref<1x128xf32, #tpu.memory_space<vmem>>, %arg6: memref<1x128xf32, #tpu.memory_space<vmem>>, %arg7: memref<128x128xf32, #tpu.memory_space<vmem>>) attributes {dimension_semantics = [#tpu.dimension_semantics<parallel>], iteration_bounds = array<i64: 1>, scalar_prefetch = 0 : i64, scratch_operands = 0 : i64, tpu.core_type = #tpu.core_type<tc>, window_params = [{transform_indices = @transform_0, window_bounds = array<i64: 128, 128>}, {transform_indices = @transform_1, window_bounds = array<i64: 128, 128>}, {pipeline_mode = #tpu.pipeline_mode<synchronous>, transform_indices = @transform_2, window_bounds = array<i64: 128, 128>}, {pipeline_mode = #tpu.pipeline_mode<synchronous>, transform_indices = @transform_3, window_bounds = array<i64: 1, 128>}, {pipeline_mode = #tpu.pipeline_mode<synchronous>, transform_indices = @transform_4, window_bounds = array<i64: 1, 128>}, {pipeline_mode = #tpu.pipeline_mode<synchronous>, transform_indices = @transform_5, window_bounds = array<i64: 1, 128>}, {transform_indices = @transform_6, window_bounds = array<i64: 128, 128>}]} {
    %c0 = arith.constant 0 : index
    %c0_0 = arith.constant 0 : index
    %0 = vector.load %arg2[%c0, %c0_0] : memref<128x128xbf16, #tpu.memory_space<vmem>>, vector<128x128xbf16>
    %c0_1 = arith.constant 0 : index
    %c0_2 = arith.constant 0 : index
    %1 = vector.load %arg3[%c0_1, %c0_2] : memref<128x128xbf16, #tpu.memory_space<vmem>>, vector<128x128xbf16>
    %cst = arith.constant dense<0.000000e+00> : vector<128x128xf32>
    %2 = tpu.matmul %0, %1, %cst {dimension_numbers = #tpu.dot_dimension_numbers<[1], [0], [0], [1], [0, 0, 1, 1], [], []>} : vector<128x128xbf16>, vector<128x128xbf16>, vector<128x128xf32> -> vector<128x128xf32>
    %c0_3 = arith.constant 0 : index
    %c0_4 = arith.constant 0 : index
    %3 = vector.load %arg1[%c0_3, %c0_4] : memref<128x128xbf16, #tpu.memory_space<vmem>>, vector<128x128xbf16>
    %4 = arith.extf %3 : vector<128x128xbf16> to vector<128x128xf32>
    %c0_5 = arith.constant 0 : index
    %c0_6 = arith.constant 0 : index
    %5 = vector.load %arg4[%c0_5, %c0_6] : memref<1x128xf32, #tpu.memory_space<vmem>>, vector<1x128xf32>
    %6 = vector.broadcast %5 : vector<1x128xf32> to vector<128x128xf32>
    %7 = arith.mulf %4, %6 : vector<128x128xf32>
    %c0_7 = arith.constant 0 : index
    %c0_8 = arith.constant 0 : index
    %8 = vector.load %arg5[%c0_7, %c0_8] : memref<1x128xf32, #tpu.memory_space<vmem>>, vector<1x128xf32>
    %9 = vector.broadcast %8 : vector<1x128xf32> to vector<128x128xf32>
    %10 = arith.mulf %2, %9 : vector<128x128xf32>
    %11 = arith.addf %7, %10 : vector<128x128xf32>
    %c0_9 = arith.constant 0 : index
    %c0_10 = arith.constant 0 : index
    %12 = vector.load %arg6[%c0_9, %c0_10] : memref<1x128xf32, #tpu.memory_space<vmem>>, vector<1x128xf32>
    %13 = vector.broadcast %12 : vector<1x128xf32> to vector<128x128xf32>
    %14 = arith.addf %11, %13 : vector<128x128xf32>
    %cst_11 = arith.constant 0.000000e+00 : f32
    %15 = vector.broadcast %cst_11 : f32 to vector<128x128xf32>
    %16 = arith.maximumf %14, %15 : vector<128x128xf32>
    %c0_12 = arith.constant 0 : index
    %c0_13 = arith.constant 0 : index
    %17 = vector.load %arg7[%c0_12, %c0_13] : memref<128x128xf32, #tpu.memory_space<vmem>>, vector<128x128xf32>
    tpu.vector_store %arg7[%c0_12, %c0_13], %16 {strides = array<i32>} : memref<128x128xf32, #tpu.memory_space<vmem>>, vector<128x128xf32>,
    return
  }
  func.func @transform_0(%arg0: i32) -> (i32, i32) {
    %c0_i32 = arith.constant 0 : i32
    %c0_i32_0 = arith.constant 0 : i32
    return %arg0, %c0_i32 : i32, i32
  }
  func.func @transform_1(%arg0: i32) -> (i32, i32) {
    %c0_i32 = arith.constant 0 : i32
    %c0_i32_0 = arith.constant 0 : i32
    return %arg0, %c0_i32 : i32, i32
  }
  func.func @transform_2(%arg0: i32) -> (i32, i32) {
    %c0_i32 = arith.constant 0 : i32
    %c0_i32_0 = arith.constant 0 : i32
    %c0_i32_1 = arith.constant 0 : i32
    return %c0_i32, %c0_i32_0 : i32, i32
  }
  func.func @transform_3(%arg0: i32) -> (i32, i32) {
    %c0_i32 = arith.constant 0 : i32
    %c0_i32_0 = arith.constant 0 : i32
    %c0_i32_1 = arith.constant 0 : i32
    return %c0_i32, %c0_i32_0 : i32, i32
  }
  func.func @transform_4(%arg0: i32) -> (i32, i32) {
    %c0_i32 = arith.constant 0 : i32
    %c0_i32_0 = arith.constant 0 : i32
    %c0_i32_1 = arith.constant 0 : i32
    return %c0_i32, %c0_i32_0 : i32, i32
  }
  func.func @transform_5(%arg0: i32) -> (i32, i32) {
    %c0_i32 = arith.constant 0 : i32
    %c0_i32_0 = arith.constant 0 : i32
    %c0_i32_1 = arith.constant 0 : i32
    return %c0_i32, %c0_i32_0 : i32, i32
  }
  func.func @transform_6(%arg0: i32) -> (i32, i32) {
    %c0_i32 = arith.constant 0 : i32
    %c0_i32_0 = arith.constant 0 : i32
    return %arg0, %c0_i32 : i32, i32
  }
}

</mosaic_0001>

<llo_original>
// kernel: restnet_down_block.4
$region0: #{restnet_down_block.4}
  #allocation0 [shape = 'u32[]', space=smem, size = 0x4, offset = 0x4, fixed_abs, tag = 'smem constant byte address 0x4 - core index']
  #allocation1 [shape = 'u32[144,128]{1,0:T(1,128)}', space=vmem, size = 0x12000, scoped, tag = 'internal scratch']
  %s0 = inlined_call_operand.vmem [shape: bf16[128,128], index: 0, kind: input, shape index: {}]
  %s1 = inlined_call_operand.vmem [shape: bf16[128,128], index: 1, kind: input, shape index: {}]
  %s2 = inlined_call_operand.vmem [shape: bf16[128,128], index: 2, kind: output, shape index: {0}]
  %s3 = inlined_call_operand.vmem [shape: f32[16,128], index: 3, kind: output, shape index: {1}]
  %4 = xla_tuple %s2, %s3
  %s5 = sld [smem:[#allocation0]]
  $region49: #{restnet_down_block.4} parent=0
    _
  %s7 = ssub.s32 1, %s5
  %s8 = scalar_select 0, %s7, %s5
  loop: start=0, step=1, limit=4
  $region2: #{restnet_down_block.4} parent=0 // loop_pre_header
    _
  $region3: #{restnet_down_block.4} parent=0 // loop_header
    %s10 = sphi 0, %s14
    %p11 = scmp.ge.s32.totalorder %s10, 4
    %s20 = sphi 0, %s22
    %s23 = sphi 0, %s20
    %s24 = sphi 0, %s23
    %s40 = sphi 0, %s24
    %s44 = sphi 0, %s44
    %s46 = sphi 0, %s44
    %s47 = sphi 0, %s46
    %s61 = sphi 0, %s47
    %s67 = sphi 0, %s69
    %s70 = sphi 0, %s67
    %s71 = sphi 0, %s70
    %s87 = sphi 0, %s71
    %s93 = sphi 0, %s95
    %s96 = sphi 0, %s93
    %s97 = sphi 0, %s96
    %s113 = sphi 0, %s97
  $region4: #{restnet_down_block.4} parent=0 // loop_header_branch
    %13 = sbr.rel (%p11) target = $region8
  $region5: #{restnet_down_block.4} parent=0 // loop_body
    %s15 = ssub.s32 %s10, 1
    %s16 = ssub.s32 %s10, 2
    %s17 = sadd.s32 %s10, 1
    %s18 = ssub.s32 %s10, %s17
    %p19 = scmp.eq.s32.totalorder %s18, 0
    %s21 = sadd.s32 %s20, 1
    %s22 = scalar_select %p19, %s20, %s21
    %p25 = pneg %p19
    %p26 = scmp.eq.s32.totalorder %s10, 1
    %p27 = por %p25, %p26
    %p28 = scmp.ne.s32.totalorder %s20, %s23
    %p29 = scmp.eq.s32.totalorder %s10, 0
    %p30 = por %p28, %p29
    %p31 = scmp.ne.s32.totalorder %s20, %s23
    %p32 = scmp.eq.s32.totalorder %s15, 1
    %p33 = por %p31, %p32
    %p34 = scmp.ne.s32.totalorder %s23, %s24
    %p35 = scmp.eq.s32.totalorder %s15, 0
    %p36 = por %p34, %p35
    %p37 = scmp.ne.s32.totalorder %s23, %s24
    %p38 = scmp.eq.s32.totalorder %s16, 1
    %p39 = por %p37, %p38
    %p41 = scmp.ne.s32.totalorder %s24, %s40
    %p42 = scmp.eq.s32.totalorder %s16, 0
    %p43 = por %p41, %p42
    %s45 = sadd.s32 %s44, 1
    %p48 = scmp.eq.s32.totalorder %s10, 1
    %p49 = scmp.ne.s32.totalorder %s44, %s46
    %p50 = scmp.eq.s32.totalorder %s10, 0
    %p51 = por %p49, %p50
    %p52 = scmp.ne.s32.totalorder %s44, %s46
    %p53 = scmp.eq.s32.totalorder %s15, 1
    %p54 = por %p52, %p53
    %p55 = scmp.ne.s32.totalorder %s46, %s47
    %p56 = scmp.eq.s32.totalorder %s15, 0
    %p57 = por %p55, %p56
    %p58 = scmp.ne.s32.totalorder %s46, %s47
    %p59 = scmp.eq.s32.totalorder %s16, 1
    %p60 = por %p58, %p59
    %p62 = scmp.ne.s32.totalorder %s47, %s61
    %p63 = scmp.eq.s32.totalorder %s16, 0
    %p64 = por %p62, %p63
    %s65 = ssub.s32 %s10, %s17
    %p66 = scmp.eq.s32.totalorder %s65, 0
    %s68 = sadd.s32 %s67, 1
    %s69 = scalar_select %p66, %s67, %s68
    %p72 = pneg %p66
    %p73 = scmp.eq.s32.totalorder %s10, 1
    %p74 = por %p72, %p73
    %p75 = scmp.ne.s32.totalorder %s67, %s70
    %p76 = scmp.eq.s32.totalorder %s10, 0
    %p77 = por %p75, %p76
    %p78 = scmp.ne.s32.totalorder %s67, %s70
    %p79 = scmp.eq.s32.totalorder %s15, 1
    %p80 = por %p78, %p79
    %p81 = scmp.ne.s32.totalorder %s70, %s71
    %p82 = scmp.eq.s32.totalorder %s15, 0
    %p83 = por %p81, %p82
    %p84 = scmp.ne.s32.totalorder %s70, %s71
    %p85 = scmp.eq.s32.totalorder %s16, 1
    %p86 = por %p84, %p85
    %p88 = scmp.ne.s32.totalorder %s71, %s87
    %p89 = scmp.eq.s32.totalorder %s16, 0
    %p90 = por %p88, %p89
    %s91 = ssub.s32 %s10, %s17
    %p92 = scmp.eq.s32.totalorder %s91, 0
    %s94 = sadd.s32 %s93, 1
    %s95 = scalar_select %p92, %s93, %s94
    %p98 = pneg %p92
    %p99 = scmp.eq.s32.totalorder %s10, 1
    %p100 = por %p98, %p99
    %p101 = scmp.ne.s32.totalorder %s93, %s96
    %p102 = scmp.eq.s32.totalorder %s10, 0
    %p103 = por %p101, %p102
    %p104 = scmp.ne.s32.totalorder %s93, %s96
    %p105 = scmp.eq.s32.totalorder %s15, 1
    %p106 = por %p104, %p105
    %p107 = scmp.ne.s32.totalorder %s96, %s97
    %p108 = scmp.eq.s32.totalorder %s15, 0
    %p109 = por %p107, %p108
    %p110 = scmp.ne.s32.totalorder %s96, %s97
    %p111 = scmp.eq.s32.totalorder %s16, 1
    %p112 = por %p110, %p111
    %p114 = scmp.ne.s32.totalorder %s97, %s113
    %p115 = scmp.eq.s32.totalorder %s16, 0
    %p116 = por %p114, %p115
    %p117 = scmp.le.s32.totalorder 1, %s10
    %p118 = scmp.lt.s32.totalorder %s10, 3
    %p119 = pnand %p117, %p118
    %p120 = pneg %p119
    // Predicated region
    $region9: #{restnet_down_block.4} parent=5 // pred_check
      _
    $region10: #{restnet_down_block.4} parent=5 // pred_check_branch
      %122 = sbr.rel (%p119) target = $region12
    $region11: #{restnet_down_block.4} parent=5 // pred_region
      %s123 = ssub.s32 %s10, 1
      // Predicated region
      $region13: #{restnet_down_block.4} parent=11 // pred_check
        %p124 = pneg %p57
      $region14: #{restnet_down_block.4} parent=11 // pred_check_branch
        %126 = sbr.rel (%p124) target = $region16
      $region15: #{restnet_down_block.4} parent=11 // pred_region
        _
      $region16: #{restnet_down_block.4} parent=11 // pred_fallthru
        _
    $region12: #{restnet_down_block.4} parent=5 // pred_fallthru
      _
    %p127 = scmp.lt.s32.totalorder %s10, 2
    // Predicated region
    $region17: #{restnet_down_block.4} parent=5 // pred_check
      %p128 = pneg %p127
    $region18: #{restnet_down_block.4} parent=5 // pred_check_branch
      %130 = sbr.rel (%p128) target = $region20
    $region19: #{restnet_down_block.4} parent=5 // pred_region
      // Predicated region
      $region21: #{restnet_down_block.4} parent=19 // pred_check
        %p131 = pneg %p30
      $region22: #{restnet_down_block.4} parent=19 // pred_check_branch
        %133 = sbr.rel (%p131) target = $region24
      $region23: #{restnet_down_block.4} parent=19 // pred_region
        %s134 = smul.u32 8, %s10
        %p135 = scmp.lt.s32.totalorder %s134, 15
        %s136 = scalar_select %p135, %s134, 15
        %s137 = smul.addr %s136, 4
        %s138 = scalar_lea.vmem %s0, %s137
        %s139 = smul.u32 8, %s10
      $region24: #{restnet_down_block.4} parent=19 // pred_fallthru
        _
    $region20: #{restnet_down_block.4} parent=5 // pred_fallthru
      _
    %p140 = scmp.le.s32.totalorder 1, %s10
    %p141 = scmp.lt.s32.totalorder %s10, 3
    %p142 = pnand %p140, %p141
    %p143 = pneg %p142
    // Predicated region
    $region25: #{restnet_down_block.4} parent=5 // pred_check
      _
    $region26: #{restnet_down_block.4} parent=5 // pred_check_branch
      %145 = sbr.rel (%p142) target = $region28
    $region27: #{restnet_down_block.4} parent=5 // pred_region
      %s146 = ssub.s32 %s10, 1
      %s147 = smul.u32 8, %s15
      %p148 = scmp.lt.s32.totalorder %s147, 15
      %s149 = scalar_select %p148, %s147, 15
      %s150 = smul.addr %s149, 4
      %s151 = scalar_lea.vmem %s0, %s150
      %p152 = pneg %p36
      %p153 = pneg %p33
      %p154 = pneg %p57
      %p155 = pneg %p54
      %p156 = pneg %p83
      %p157 = pneg %p80
      %s158 = smul.u32 8, %s15
      %p159 = scmp.lt.s32.totalorder %s158, 15
      %s160 = scalar_select %p159, %s158, 15
      %s161 = smul.addr %s160, 4
      %s162 = scalar_lea.vmem %s2, %s161
      %p163 = pneg %p109
      %p164 = pneg %p106
      %p165 = scmp.lt.s32.totalorder %s15, 1
      %s166 = scalar_select %p165, %s15, 1
      %s167 = smul.addr %s166, 8
      %s168 = scalar_lea.vmem %s3, %s167
      %s169 = smul.u32 8, %s15
      %p170 = scmp.lt.s32.totalorder %s169, 15
      %s171 = scalar_select %p170, %s169, 15
      %s172 = smul.addr %s171, 4
      %s173 = scalar_lea.vmem %s0, %s172
      %s174 = smul.u32 8, %s15
      %s175 = smul.u32 8, %s15
      %p176 = scmp.lt.s32.totalorder %s175, 15
      %s177 = scalar_select %p176, %s175, 15
      %s178 = smul.addr %s177, 4
      %s179 = scalar_lea.vmem %s2, %s178
      %s180 = smul.u32 8, %s15
      %p181 = scmp.lt.s32.totalorder %s15, 1
      %s182 = scalar_select %p181, %s15, 1
      %s183 = smul.addr %s182, 8
      %s184 = scalar_lea.vmem %s3, %s183
      %v186 = vld [vmem:[%s173] sm:$0xf]
      %v187 = vld [vmem:[%s173 + $0x4] sm:$0xf]
      %v188 = vld [vmem:[%s173 + $0x8] sm:$0xf]
      %v189 = vld [vmem:[%s173 + $0xc] sm:$0xf]
      %v190 = vld [vmem:[%s173 + $0x10] sm:$0xf]
      %v191 = vld [vmem:[%s173 + $0x14] sm:$0xf]
      %v192 = vld [vmem:[%s173 + $0x18] sm:$0xf]
      %v193 = vld [vmem:[%s173 + $0x1c] sm:$0xf]
      %v194 = vld [vmem:[%s1] sm:$0xf]
      %v195 = vld [vmem:[%s1 + $0x4] sm:$0xf]
      %v196 = vld [vmem:[%s1 + $0x8] sm:$0xf]
      %v197 = vld [vmem:[%s1 + $0xc] sm:$0xf]
      %v198 = vld [vmem:[%s1 + $0x10] sm:$0xf]
      %v199 = vld [vmem:[%s1 + $0x14] sm:$0xf]
      %v200 = vld [vmem:[%s1 + $0x18] sm:$0xf]
      %v201 = vld [vmem:[%s1 + $0x1c] sm:$0xf]
      %v202 = vld [vmem:[%s1 + $0x20] sm:$0xf]
      %v203 = vld [vmem:[%s1 + $0x24] sm:$0xf]
      %v204 = vld [vmem:[%s1 + $0x28] sm:$0xf]
      %v205 = vld [vmem:[%s1 + $0x2c] sm:$0xf]
      %v206 = vld [vmem:[%s1 + $0x30] sm:$0xf]
      %v207 = vld [vmem:[%s1 + $0x34] sm:$0xf]
      %v208 = vld [vmem:[%s1 + $0x38] sm:$0xf]
      %v209 = vld [vmem:[%s1 + $0x3c] sm:$0xf]
      %v218 = vunpack.c.l.b16 %v186
      %v219 = vunpack.c.l.b16 %v187
      %v220 = vunpack.c.l.b16 %v188
      %v221 = vunpack.c.l.b16 %v189
      %v222 = vunpack.c.l.b16 %v190
      %v223 = vunpack.c.l.b16 %v191
      %v224 = vunpack.c.l.b16 %v192
      %v225 = vunpack.c.l.b16 %v193
      %v226 = vpack.c.b16 %v219, %v218
      %v227 = vpack.c.b16 %v221, %v220
      %v228 = vpack.c.b16 %v223, %v222
      %v229 = vpack.c.b16 %v225, %v224
      %v250 = vunpack.c.l.b16 %v194
      %v251 = vunpack.c.l.b16 %v195
      %v252 = vunpack.c.l.b16 %v196
      %v253 = vunpack.c.l.b16 %v197
      %v254 = vunpack.c.l.b16 %v198
      %v255 = vunpack.c.l.b16 %v199
      %v256 = vunpack.c.l.b16 %v200
      %v257 = vunpack.c.l.b16 %v201
      %v258 = vunpack.c.l.b16 %v202
      %v259 = vunpack.c.l.b16 %v203
      %v260 = vunpack.c.l.b16 %v204
      %v261 = vunpack.c.l.b16 %v205
      %v262 = vunpack.c.l.b16 %v206
      %v263 = vunpack.c.l.b16 %v207
      %v264 = vunpack.c.l.b16 %v208
      %v265 = vunpack.c.l.b16 %v209
      %v266 = vpack.c.b16 %v251, %v250
      %v267 = vpack.c.b16 %v253, %v252
      %v268 = vpack.c.b16 %v255, %v254
      %v269 = vpack.c.b16 %v257, %v256
      %v270 = vpack.c.b16 %v259, %v258
      %v271 = vpack.c.b16 %v261, %v260
      %v272 = vpack.c.b16 %v263, %v262
      %v273 = vpack.c.b16 %v265, %v264
      %282 = vmatprep.subr.bf16.mxu0 0
      %283 = vmatpush1.bf16.msra.mxu0 %v266
      %284 = vmatprep.subr.bf16.mxu0 0
      %285 = vmatpush1.bf16.msra.mxu0 %v267
      %286 = vmatprep.subr.bf16.mxu0 0
      %287 = vmatpush1.bf16.msra.mxu0 %v268
      %288 = vmatprep.subr.bf16.mxu0 0
      %289 = vmatpush1.bf16.msra.mxu0 %v269
      %290 = vmatprep.subr.bf16.mxu0 0
      %291 = vmatpush1.bf16.msra.mxu0 %v270
      %292 = vmatprep.subr.bf16.mxu0 0
      %293 = vmatpush1.bf16.msra.mxu0 %v271
      %294 = vmatprep.subr.bf16.mxu0 0
      %295 = vmatpush1.bf16.msra.mxu0 %v272
      %296 = vmatprep.subr.bf16.mxu0 0
      %297 = vmatpush1.bf16.msra.mxu0 %v273
      %298 = vmatprep.subr.bf16.mxu0 0
      %299 = vmatpush1.bf16.msra.mxu0 0
      %300 = vmatprep.subr.bf16.mxu0 0
      %301 = vmatpush1.bf16.msra.mxu0 0
      %302 = vmatprep.subr.bf16.mxu0 0
      %303 = vmatpush1.bf16.msra.mxu0 0
      %304 = vmatprep.subr.bf16.mxu0 0
      %305 = vmatpush1.bf16.msra.mxu0 0
      %306 = vmatprep.subr.bf16.mxu0 0
      %307 = vmatpush1.bf16.msra.mxu0 0
      %308 = vmatprep.subr.bf16.mxu0 0
      %309 = vmatpush1.bf16.msra.mxu0 0
      %310 = vmatprep.subr.bf16.mxu0 0
      %311 = vmatpush1.bf16.msra.mxu0 0
      %312 = vmatprep.subr.bf16.mxu0 0
      %313 = vmatpush1.bf16.msra.mxu0 0
      %314 = vmatprep.mubr.bf16.mxu0 0
      %315 = vmatmul.mubr.bf16.gmra.mrb[0].mxu0 %v226
      %v316 = vpop.f32.mrb[0].mxu0
      %v317 = vadd.f32 0.0, %v316
      %v318 = vpop.f32.mrb[0].mxu0
      %v319 = vpop.f32.mrb[0].mxu0
      %v320 = vadd.f32 0.0, %v319
      %v321 = vpop.f32.mrb[0].mxu0
      %322 = vmatprep.mubr.bf16.mxu0 0
      %323 = vmatmul.mubr.bf16.gmra.mrb[0].mxu0 %v227
      %v324 = vpop.f32.mrb[0].mxu0
      %v325 = vadd.f32 0.0, %v324
      %v326 = vpop.f32.mrb[0].mxu0
      %v327 = vpop.f32.mrb[0].mxu0
      %v328 = vadd.f32 0.0, %v327
      %v329 = vpop.f32.mrb[0].mxu0
      %330 = vmatprep.mubr.bf16.mxu0 0
      %331 = vmatmul.mubr.bf16.gmra.mrb[0].mxu0 %v228
      %v332 = vpop.f32.mrb[0].mxu0
      %v333 = vadd.f32 0.0, %v332
      %v334 = vpop.f32.mrb[0].mxu0
      %v335 = vpop.f32.mrb[0].mxu0
      %v336 = vadd.f32 0.0, %v335
      %v337 = vpop.f32.mrb[0].mxu0
      %338 = vmatprep.mubr.bf16.mxu0 0
      %339 = vmatmul.mubr.bf16.gmra.mrb[0].mxu0 %v229
      %v340 = vpop.f32.mrb[0].mxu0
      %v341 = vadd.f32 0.0, %v340
      %v342 = vpop.f32.mrb[0].mxu0
      %v343 = vpop.f32.mrb[0].mxu0
      %v344 = vadd.f32 0.0, %v343
      %v345 = vpop.f32.mrb[0].mxu0
      %346 = vdwg.mxu0
      %v347 = vpack.c.bf16 %v320, %v317
      %v348 = vpack.c.bf16 %v328, %v325
      %v349 = vpack.c.bf16 %v336, %v333
      %v350 = vpack.c.bf16 %v344, %v341
      %v355 = vunpack.c.l.b16 %v347
      %v356 = vunpack.c.h.b16 %v347
      %v357 = vunpack.c.l.b16 %v348
      %v358 = vunpack.c.h.b16 %v348
      %v359 = vunpack.c.l.b16 %v349
      %v360 = vunpack.c.h.b16 %v349
      %v361 = vunpack.c.l.b16 %v350
      %v362 = vunpack.c.h.b16 %v350
      %v363 = vpack.c.b16 %v355, %v355
      %v364 = vpack.c.b16 %v356, %v356
      %v365 = vpack.c.b16 %v357, %v357
      %v366 = vpack.c.b16 %v358, %v358
      %v367 = vpack.c.b16 %v359, %v359
      %v368 = vpack.c.b16 %v360, %v360
      %v369 = vpack.c.b16 %v361, %v361
      %v370 = vpack.c.b16 %v362, %v362
      %379 = vst [vmem:[%s179] sm:$0xf] %v363
      %380 = vst [vmem:[%s179 + $0x4] sm:$0xf] %v364
      %381 = vst [vmem:[%s179 + $0x8] sm:$0xf] %v365
      %382 = vst [vmem:[%s179 + $0xc] sm:$0xf] %v366
      %383 = vst [vmem:[%s179 + $0x10] sm:$0xf] %v367
      %384 = vst [vmem:[%s179 + $0x14] sm:$0xf] %v368
      %385 = vst [vmem:[%s179 + $0x18] sm:$0xf] %v369
      %386 = vst [vmem:[%s179 + $0x1c] sm:$0xf] %v370
      %387 = vst [vmem:[%s184] sm:$0xff] 0.0
      %v388 = vadd.f32 %v317, %v320
      %v389 = vadd.f32 %v388, %v325
      %v390 = vadd.f32 %v389, %v328
      %v391 = vadd.f32 %v390, %v333
      %v392 = vadd.f32 %v391, %v336
      %v393 = vadd.f32 %v392, %v341
      %v394 = vadd.f32 %v393, %v344
      %v395 = vrot.slane %v394, 4
      %v396 = vadd.f32 %v394, %v395
      %v397 = vrot.slane %v396, 2
      %v398 = vadd.f32 %v396, %v397
      %v399 = vrot.slane %v398, 1
      %v400 = vadd.f32 %v398, %v399
      %401 = vst [vmem:[%s184] sm:$0x1] %v400
      %v402 = vmul.f32 %v317, %v317
      %v403 = vmul.f32 %v320, %v320
      %v404 = vmul.f32 %v325, %v325
      %v405 = vmul.f32 %v328, %v328
      %v406 = vmul.f32 %v333, %v333
      %v407 = vmul.f32 %v336, %v336
      %v408 = vmul.f32 %v341, %v341
      %v409 = vmul.f32 %v344, %v344
      %v410 = vadd.f32 %v402, %v403
      %v411 = vadd.f32 %v410, %v404
      %v412 = vadd.f32 %v411, %v405
      %v413 = vadd.f32 %v412, %v406
      %v414 = vadd.f32 %v413, %v407
      %v415 = vadd.f32 %v414, %v408
      %v416 = vadd.f32 %v415, %v409
      %v417 = vrot.slane %v416, 4
      %v418 = vadd.f32 %v416, %v417
      %v419 = vrot.slane %v418, 2
      %v420 = vadd.f32 %v418, %v419
      %v421 = vrot.slane %v420, 1
      %v422 = vadd.f32 %v420, %v421
      %423 = vst [vmem:[%s184 + $0x1] sm:$0x1] %v422
      %s424 = smul.u32 8, %s15
      %p425 = scmp.lt.s32.totalorder %s424, 15
      %s426 = scalar_select %p425, %s424, 15
      %s427 = smul.addr %s426, 4
      %s428 = scalar_lea.vmem %s2, %s427
      %p429 = scmp.lt.s32.totalorder %s15, 1
      %s430 = scalar_select %p429, %s15, 1
      %s431 = smul.addr %s430, 8
      %s432 = scalar_lea.vmem %s3, %s431
      // Predicated region
      $region29: #{restnet_down_block.4} parent=27 // pred_check
        %p433 = pneg %p80
      $region30: #{restnet_down_block.4} parent=27 // pred_check_branch
        %435 = sbr.rel (%p433) target = $region32
      $region31: #{restnet_down_block.4} parent=27 // pred_region
        %s436 = smul.u32 8, %s15
      $region32: #{restnet_down_block.4} parent=27 // pred_fallthru
        _
      // Predicated region
      $region33: #{restnet_down_block.4} parent=27 // pred_check
        %p437 = pneg %p106
      $region34: #{restnet_down_block.4} parent=27 // pred_check_branch
        %439 = sbr.rel (%p437) target = $region36
      $region35: #{restnet_down_block.4} parent=27 // pred_region
        _
      $region36: #{restnet_down_block.4} parent=27 // pred_fallthru
        _
    $region28: #{restnet_down_block.4} parent=5 // pred_fallthru
      _
    %p440 = scmp.le.s32.totalorder 2, %s10
    // Predicated region
    $region37: #{restnet_down_block.4} parent=5 // pred_check
      %p441 = pneg %p440
    $region38: #{restnet_down_block.4} parent=5 // pred_check_branch
      %443 = sbr.rel (%p441) target = $region40
    $region39: #{restnet_down_block.4} parent=5 // pred_region
      %s444 = ssub.s32 %s10, 2
      // Predicated region
      $region41: #{restnet_down_block.4} parent=39 // pred_check
        %p445 = pneg %p86
      $region42: #{restnet_down_block.4} parent=39 // pred_check_branch
        %447 = sbr.rel (%p445) target = $region44
      $region43: #{restnet_down_block.4} parent=39 // pred_region
        %s448 = smul.u32 8, %s16
        %p449 = scmp.lt.s32.totalorder %s448, 15
        %s450 = scalar_select %p449, %s448, 15
        %s451 = smul.addr %s450, 4
        %s452 = scalar_lea.vmem %s2, %s451
      $region44: #{restnet_down_block.4} parent=39 // pred_fallthru
        _
      // Predicated region
      $region45: #{restnet_down_block.4} parent=39 // pred_check
        %p453 = pneg %p112
      $region46: #{restnet_down_block.4} parent=39 // pred_check_branch
        %455 = sbr.rel (%p453) target = $region48
      $region47: #{restnet_down_block.4} parent=39 // pred_region
        %p456 = scmp.lt.s32.totalorder %s16, 1
        %s457 = scalar_select %p456, %s16, 1
        %s458 = smul.addr %s457, 8
        %s459 = scalar_lea.vmem %s3, %s458
      $region48: #{restnet_down_block.4} parent=39 // pred_fallthru
        _
    $region40: #{restnet_down_block.4} parent=5 // pred_fallthru
      _
  $region6: #{restnet_down_block.4} parent=0 // loop_footer
    %s14 = sadd.s32 1, %s10
  $region7: #{restnet_down_block.4} parent=0 // loop_footer_branch
    %9 = sbr.rel target = $region3
  $region8: #{restnet_down_block.4} parent=0 // loop_exit
    _

// kernel: restnet_down_block.5
$region0: #{restnet_down_block.5}
  #allocation0 [shape = 'u32[]', space=smem, size = 0x4, offset = 0x4, fixed_abs, tag = 'smem constant byte address 0x4 - core index']
  #allocation1 [shape = 'u32[144,128]{1,0:T(1,128)}', space=vmem, size = 0x12000, scoped, tag = 'internal scratch']
  %s0 = inlined_call_operand.vmem [shape: bf16[128,128], index: 0, kind: input, shape index: {}]
  %s1 = inlined_call_operand.vmem [shape: f32[1,128], index: 1, kind: input, shape index: {}]
  %s2 = inlined_call_operand.vmem [shape: f32[1,128], index: 2, kind: input, shape index: {}]
  %s3 = inlined_call_operand.vmem [shape: bf16[128,128], index: 3, kind: output, shape index: {}]
  %s4 = sld [smem:[#allocation0]]
  $region22: #{restnet_down_block.5} parent=0
    _
  %s6 = ssub.s32 1, %s4
  %s7 = scalar_select 0, %s6, %s4
  // Predicated region
  $region2: #{restnet_down_block.5} parent=0 // pred_check
    _
  $region3: #{restnet_down_block.5} parent=0 // pred_check_branch
    %9 = sbr.rel (0) target = $region5
  $region4: #{restnet_down_block.5} parent=0 // pred_region
    _
  $region5: #{restnet_down_block.5} parent=0 // pred_fallthru
    _
  // Predicated region
  $region6: #{restnet_down_block.5} parent=0 // pred_check
    _
  $region7: #{restnet_down_block.5} parent=0 // pred_check_branch
    %11 = sbr.rel (0) target = $region9
  $region8: #{restnet_down_block.5} parent=0 // pred_region
    _
  $region9: #{restnet_down_block.5} parent=0 // pred_fallthru
    _
  // Predicated region
  $region10: #{restnet_down_block.5} parent=0 // pred_check
    _
  $region11: #{restnet_down_block.5} parent=0 // pred_check_branch
    %13 = sbr.rel (0) target = $region13
  $region12: #{restnet_down_block.5} parent=0 // pred_region
    _
  $region13: #{restnet_down_block.5} parent=0 // pred_fallthru
    _
  %v14 = vld [vmem:[%s0] sm:$0xf]
  %v15 = vld [vmem:[%s0 + $0x4] sm:$0xf]
  %v16 = vld [vmem:[%s0 + $0x8] sm:$0xf]
  %v17 = vld [vmem:[%s0 + $0xc] sm:$0xf]
  %v18 = vld [vmem:[%s0 + $0x10] sm:$0xf]
  %v19 = vld [vmem:[%s0 + $0x14] sm:$0xf]
  %v20 = vld [vmem:[%s0 + $0x18] sm:$0xf]
  %v21 = vld [vmem:[%s0 + $0x1c] sm:$0xf]
  %v22 = vld [vmem:[%s0 + $0x20] sm:$0xf]
  %v23 = vld [vmem:[%s0 + $0x24] sm:$0xf]
  %v24 = vld [vmem:[%s0 + $0x28] sm:$0xf]
  %v25 = vld [vmem:[%s0 + $0x2c] sm:$0xf]
  %v26 = vld [vmem:[%s0 + $0x30] sm:$0xf]
  %v27 = vld [vmem:[%s0 + $0x34] sm:$0xf]
  %v28 = vld [vmem:[%s0 + $0x38] sm:$0xf]
  %v29 = vld [vmem:[%s0 + $0x3c] sm:$0xf]
  %v30 = vunpack.c.l.bf16 %v14
  %v31 = vunpack.c.l.bf16 %v15
  %v32 = vunpack.c.l.bf16 %v16
  %v33 = vunpack.c.l.bf16 %v17
  %v34 = vunpack.c.l.bf16 %v18
  %v35 = vunpack.c.l.bf16 %v19
  %v36 = vunpack.c.l.bf16 %v20
  %v37 = vunpack.c.l.bf16 %v21
  %v38 = vunpack.c.l.bf16 %v22
  %v39 = vunpack.c.l.bf16 %v23
  %v40 = vunpack.c.l.bf16 %v24
  %v41 = vunpack.c.l.bf16 %v25
  %v42 = vunpack.c.l.bf16 %v26
  %v43 = vunpack.c.l.bf16 %v27
  %v44 = vunpack.c.l.bf16 %v28
  %v45 = vunpack.c.l.bf16 %v29
  %v46 = vld [vmem:[%s1] sm:$0x1]
  %v48 = vlaneseq
  %v49 = vshrl.u32 %v48, 7
  %v50 = vsub.s32 0, %v49
  %v51 = vrot.slane %v46, %v50
  %v53 = vmul.f32 %v30, %v51
  %v54 = vmul.f32 %v31, %v51
  %v55 = vmul.f32 %v32, %v51
  %v56 = vmul.f32 %v33, %v51
  %v57 = vmul.f32 %v34, %v51
  %v58 = vmul.f32 %v35, %v51
  %v59 = vmul.f32 %v36, %v51
  %v60 = vmul.f32 %v37, %v51
  %v61 = vmul.f32 %v38, %v51
  %v62 = vmul.f32 %v39, %v51
  %v63 = vmul.f32 %v40, %v51
  %v64 = vmul.f32 %v41, %v51
  %v65 = vmul.f32 %v42, %v51
  %v66 = vmul.f32 %v43, %v51
  %v67 = vmul.f32 %v44, %v51
  %v68 = vmul.f32 %v45, %v51
  %v69 = vld [vmem:[%s2] sm:$0x1]
  %v71 = vlaneseq
  %v72 = vshrl.u32 %v71, 7
  %v73 = vsub.s32 0, %v72
  %v74 = vrot.slane %v69, %v73
  %v76 = vadd.f32 %v53, %v74
  %v77 = vadd.f32 %v54, %v74
  %v78 = vadd.f32 %v55, %v74
  %v79 = vadd.f32 %v56, %v74
  %v80 = vadd.f32 %v57, %v74
  %v81 = vadd.f32 %v58, %v74
  %v82 = vadd.f32 %v59, %v74
  %v83 = vadd.f32 %v60, %v74
  %v84 = vadd.f32 %v61, %v74
  %v85 = vadd.f32 %v62, %v74
  %v86 = vadd.f32 %v63, %v74
  %v87 = vadd.f32 %v64, %v74
  %v88 = vadd.f32 %v65, %v74
  %v89 = vadd.f32 %v66, %v74
  %v90 = vadd.f32 %v67, %v74
  %v91 = vadd.f32 %v68, %v74
  %v92 = vmax.f32 %v76, 0.0
  %v93 = vmax.f32 %v77, 0.0
  %v94 = vmax.f32 %v78, 0.0
  %v95 = vmax.f32 %v79, 0.0
  %v96 = vmax.f32 %v80, 0.0
  %v97 = vmax.f32 %v81, 0.0
  %v98 = vmax.f32 %v82, 0.0
  %v99 = vmax.f32 %v83, 0.0
  %v100 = vmax.f32 %v84, 0.0
  %v101 = vmax.f32 %v85, 0.0
  %v102 = vmax.f32 %v86, 0.0
  %v103 = vmax.f32 %v87, 0.0
  %v104 = vmax.f32 %v88, 0.0
  %v105 = vmax.f32 %v89, 0.0
  %v106 = vmax.f32 %v90, 0.0
  %v107 = vmax.f32 %v91, 0.0
  %v108 = vpack.c.bf16 %v93, %v92
  %v109 = vpack.c.bf16 %v95, %v94
  %v110 = vpack.c.bf16 %v97, %v96
  %v111 = vpack.c.bf16 %v99, %v98
  %v112 = vpack.c.bf16 %v101, %v100
  %v113 = vpack.c.bf16 %v103, %v102
  %v114 = vpack.c.bf16 %v105, %v104
  %v115 = vpack.c.bf16 %v107, %v106
  %v124 = vunpack.c.l.b16 %v108
  %v125 = vunpack.c.h.b16 %v108
  %v126 = vunpack.c.l.b16 %v109
  %v127 = vunpack.c.h.b16 %v109
  %v128 = vunpack.c.l.b16 %v110
  %v129 = vunpack.c.h.b16 %v110
  %v130 = vunpack.c.l.b16 %v111
  %v131 = vunpack.c.h.b16 %v111
  %v132 = vunpack.c.l.b16 %v112
  %v133 = vunpack.c.h.b16 %v112
  %v134 = vunpack.c.l.b16 %v113
  %v135 = vunpack.c.h.b16 %v113
  %v136 = vunpack.c.l.b16 %v114
  %v137 = vunpack.c.h.b16 %v114
  %v138 = vunpack.c.l.b16 %v115
  %v139 = vunpack.c.h.b16 %v115
  %v140 = vpack.c.b16 %v124, %v124
  %v141 = vpack.c.b16 %v125, %v125
  %v142 = vpack.c.b16 %v126, %v126
  %v143 = vpack.c.b16 %v127, %v127
  %v144 = vpack.c.b16 %v128, %v128
  %v145 = vpack.c.b16 %v129, %v129
  %v146 = vpack.c.b16 %v130, %v130
  %v147 = vpack.c.b16 %v131, %v131
  %v148 = vpack.c.b16 %v132, %v132
  %v149 = vpack.c.b16 %v133, %v133
  %v150 = vpack.c.b16 %v134, %v134
  %v151 = vpack.c.b16 %v135, %v135
  %v152 = vpack.c.b16 %v136, %v136
  %v153 = vpack.c.b16 %v137, %v137
  %v154 = vpack.c.b16 %v138, %v138
  %v155 = vpack.c.b16 %v139, %v139
  %172 = vst [vmem:[%s3] sm:$0xf] %v140
  %173 = vst [vmem:[%s3 + $0x4] sm:$0xf] %v141
  %174 = vst [vmem:[%s3 + $0x8] sm:$0xf] %v142
  %175 = vst [vmem:[%s3 + $0xc] sm:$0xf] %v143
  %176 = vst [vmem:[%s3 + $0x10] sm:$0xf] %v144
  %177 = vst [vmem:[%s3 + $0x14] sm:$0xf] %v145
  %178 = vst [vmem:[%s3 + $0x18] sm:$0xf] %v146
  %179 = vst [vmem:[%s3 + $0x1c] sm:$0xf] %v147
  %180 = vst [vmem:[%s3 + $0x20] sm:$0xf] %v148
  %181 = vst [vmem:[%s3 + $0x24] sm:$0xf] %v149
  %182 = vst [vmem:[%s3 + $0x28] sm:$0xf] %v150
  %183 = vst [vmem:[%s3 + $0x2c] sm:$0xf] %v151
  %184 = vst [vmem:[%s3 + $0x30] sm:$0xf] %v152
  %185 = vst [vmem:[%s3 + $0x34] sm:$0xf] %v153
  %186 = vst [vmem:[%s3 + $0x38] sm:$0xf] %v154
  %187 = vst [vmem:[%s3 + $0x3c] sm:$0xf] %v155
  // Predicated region
  $region14: #{restnet_down_block.5} parent=0 // pred_check
    _
  $region15: #{restnet_down_block.5} parent=0 // pred_check_branch
    %189 = sbr.rel (0) target = $region17
  $region16: #{restnet_down_block.5} parent=0 // pred_region
    _
  $region17: #{restnet_down_block.5} parent=0 // pred_fallthru
    _
  // Predicated region
  $region18: #{restnet_down_block.5} parent=0 // pred_check
    _
  $region19: #{restnet_down_block.5} parent=0 // pred_check_branch
    %191 = sbr.rel (0) target = $region21
  $region20: #{restnet_down_block.5} parent=0 // pred_region
    _
  $region21: #{restnet_down_block.5} parent=0 // pred_fallthru
    _

// kernel: restnet_down_block.6
$region0: #{restnet_down_block.6}
  #allocation0 [shape = 'u32[]', space=smem, size = 0x4, offset = 0x4, fixed_abs, tag = 'smem constant byte address 0x4 - core index']
  #allocation1 [shape = 'u32[144,128]{1,0:T(1,128)}', space=vmem, size = 0x12000, scoped, tag = 'internal scratch']
  %s0 = inlined_call_operand.vmem [shape: bf16[128,128], index: 0, kind: input, shape index: {}]
  %s1 = inlined_call_operand.vmem [shape: bf16[128,128], index: 1, kind: input, shape index: {}]
  %s2 = inlined_call_operand.vmem [shape: bf16[128,128], index: 2, kind: input, shape index: {}]
  %s3 = inlined_call_operand.vmem [shape: bf16[128,128], index: 3, kind: input, shape index: {}]
  %s4 = inlined_call_operand.vmem [shape: bf16[128,128], index: 4, kind: output, shape index: {0}]
  %s5 = inlined_call_operand.vmem [shape: f32[16,128], index: 5, kind: output, shape index: {1}]
  %s6 = inlined_call_operand.vmem [shape: f32[16,128], index: 6, kind: output, shape index: {2}]
  %7 = xla_tuple %s4, %s5, %s6
  %s8 = sld [smem:[#allocation0]]
  $region65: #{restnet_down_block.6} parent=0
    _
  %s10 = ssub.s32 1, %s8
  %s11 = scalar_select 0, %s10, %s8
  loop: start=0, step=1, limit=4
  $region2: #{restnet_down_block.6} parent=0 // loop_pre_header
    _
  $region3: #{restnet_down_block.6} parent=0 // loop_header
    %s13 = sphi 0, %s17
    %p14 = scmp.ge.s32.totalorder %s13, 4
    %s23 = sphi 0, %s25
    %s26 = sphi 0, %s23
    %s27 = sphi 0, %s26
    %s43 = sphi 0, %s27
    %s49 = sphi 0, %s51
    %s52 = sphi 0, %s49
    %s53 = sphi 0, %s52
    %s69 = sphi 0, %s53
    %s73 = sphi 0, %s73
    %s75 = sphi 0, %s73
    %s76 = sphi 0, %s75
    %s90 = sphi 0, %s76
    %s94 = sphi 0, %s94
    %s96 = sphi 0, %s94
    %s97 = sphi 0, %s96
    %s111 = sphi 0, %s97
    %s117 = sphi 0, %s119
    %s120 = sphi 0, %s117
    %s121 = sphi 0, %s120
    %s137 = sphi 0, %s121
    %s143 = sphi 0, %s145
    %s146 = sphi 0, %s143
    %s147 = sphi 0, %s146
    %s163 = sphi 0, %s147
    %s169 = sphi 0, %s171
    %s172 = sphi 0, %s169
    %s173 = sphi 0, %s172
    %s189 = sphi 0, %s173
  $region4: #{restnet_down_block.6} parent=0 // loop_header_branch
    %16 = sbr.rel (%p14) target = $region8
  $region5: #{restnet_down_block.6} parent=0 // loop_body
    %s18 = ssub.s32 %s13, 1
    %s19 = ssub.s32 %s13, 2
    %s20 = sadd.s32 %s13, 1
    %s21 = ssub.s32 %s13, %s20
    %p22 = scmp.eq.s32.totalorder %s21, 0
    %s24 = sadd.s32 %s23, 1
    %s25 = scalar_select %p22, %s23, %s24
    %p28 = pneg %p22
    %p29 = scmp.eq.s32.totalorder %s13, 1
    %p30 = por %p28, %p29
    %p31 = scmp.ne.s32.totalorder %s23, %s26
    %p32 = scmp.eq.s32.totalorder %s13, 0
    %p33 = por %p31, %p32
    %p34 = scmp.ne.s32.totalorder %s23, %s26
    %p35 = scmp.eq.s32.totalorder %s18, 1
    %p36 = por %p34, %p35
    %p37 = scmp.ne.s32.totalorder %s26, %s27
    %p38 = scmp.eq.s32.totalorder %s18, 0
    %p39 = por %p37, %p38
    %p40 = scmp.ne.s32.totalorder %s26, %s27
    %p41 = scmp.eq.s32.totalorder %s19, 1
    %p42 = por %p40, %p41
    %p44 = scmp.ne.s32.totalorder %s27, %s43
    %p45 = scmp.eq.s32.totalorder %s19, 0
    %p46 = por %p44, %p45
    %s47 = ssub.s32 %s13, %s20
    %p48 = scmp.eq.s32.totalorder %s47, 0
    %s50 = sadd.s32 %s49, 1
    %s51 = scalar_select %p48, %s49, %s50
    %p54 = pneg %p48
    %p55 = scmp.eq.s32.totalorder %s13, 1
    %p56 = por %p54, %p55
    %p57 = scmp.ne.s32.totalorder %s49, %s52
    %p58 = scmp.eq.s32.totalorder %s13, 0
    %p59 = por %p57, %p58
    %p60 = scmp.ne.s32.totalorder %s49, %s52
    %p61 = scmp.eq.s32.totalorder %s18, 1
    %p62 = por %p60, %p61
    %p63 = scmp.ne.s32.totalorder %s52, %s53
    %p64 = scmp.eq.s32.totalorder %s18, 0
    %p65 = por %p63, %p64
    %p66 = scmp.ne.s32.totalorder %s52, %s53
    %p67 = scmp.eq.s32.totalorder %s19, 1
    %p68 = por %p66, %p67
    %p70 = scmp.ne.s32.totalorder %s53, %s69
    %p71 = scmp.eq.s32.totalorder %s19, 0
    %p72 = por %p70, %p71
    %s74 = sadd.s32 %s73, 1
    %p77 = scmp.eq.s32.totalorder %s13, 1
    %p78 = scmp.ne.s32.totalorder %s73, %s75
    %p79 = scmp.eq.s32.totalorder %s13, 0
    %p80 = por %p78, %p79
    %p81 = scmp.ne.s32.totalorder %s73, %s75
    %p82 = scmp.eq.s32.totalorder %s18, 1
    %p83 = por %p81, %p82
    %p84 = scmp.ne.s32.totalorder %s75, %s76
    %p85 = scmp.eq.s32.totalorder %s18, 0
    %p86 = por %p84, %p85
    %p87 = scmp.ne.s32.totalorder %s75, %s76
    %p88 = scmp.eq.s32.totalorder %s19, 1
    %p89 = por %p87, %p88
    %p91 = scmp.ne.s32.totalorder %s76, %s90
    %p92 = scmp.eq.s32.totalorder %s19, 0
    %p93 = por %p91, %p92
    %s95 = sadd.s32 %s94, 1
    %p98 = scmp.eq.s32.totalorder %s13, 1
    %p99 = scmp.ne.s32.totalorder %s94, %s96
    %p100 = scmp.eq.s32.totalorder %s13, 0
    %p101 = por %p99, %p100
    %p102 = scmp.ne.s32.totalorder %s94, %s96
    %p103 = scmp.eq.s32.totalorder %s18, 1
    %p104 = por %p102, %p103
    %p105 = scmp.ne.s32.totalorder %s96, %s97
    %p106 = scmp.eq.s32.totalorder %s18, 0
    %p107 = por %p105, %p106
    %p108 = scmp.ne.s32.totalorder %s96, %s97
    %p109 = scmp.eq.s32.totalorder %s19, 1
    %p110 = por %p108, %p109
    %p112 = scmp.ne.s32.totalorder %s97, %s111
    %p113 = scmp.eq.s32.totalorder %s19, 0
    %p114 = por %p112, %p113
    %s115 = ssub.s32 %s13, %s20
    %p116 = scmp.eq.s32.totalorder %s115, 0
    %s118 = sadd.s32 %s117, 1
    %s119 = scalar_select %p116, %s117, %s118
    %p122 = pneg %p116
    %p123 = scmp.eq.s32.totalorder %s13, 1
    %p124 = por %p122, %p123
    %p125 = scmp.ne.s32.totalorder %s117, %s120
    %p126 = scmp.eq.s32.totalorder %s13, 0
    %p127 = por %p125, %p126
    %p128 = scmp.ne.s32.totalorder %s117, %s120
    %p129 = scmp.eq.s32.totalorder %s18, 1
    %p130 = por %p128, %p129
    %p131 = scmp.ne.s32.totalorder %s120, %s121
    %p132 = scmp.eq.s32.totalorder %s18, 0
    %p133 = por %p131, %p132
    %p134 = scmp.ne.s32.totalorder %s120, %s121
    %p135 = scmp.eq.s32.totalorder %s19, 1
    %p136 = por %p134, %p135
    %p138 = scmp.ne.s32.totalorder %s121, %s137
    %p139 = scmp.eq.s32.totalorder %s19, 0
    %p140 = por %p138, %p139
    %s141 = ssub.s32 %s13, %s20
    %p142 = scmp.eq.s32.totalorder %s141, 0
    %s144 = sadd.s32 %s143, 1
    %s145 = scalar_select %p142, %s143, %s144
    %p148 = pneg %p142
    %p149 = scmp.eq.s32.totalorder %s13, 1
    %p150 = por %p148, %p149
    %p151 = scmp.ne.s32.totalorder %s143, %s146
    %p152 = scmp.eq.s32.totalorder %s13, 0
    %p153 = por %p151, %p152
    %p154 = scmp.ne.s32.totalorder %s143, %s146
    %p155 = scmp.eq.s32.totalorder %s18, 1
    %p156 = por %p154, %p155
    %p157 = scmp.ne.s32.totalorder %s146, %s147
    %p158 = scmp.eq.s32.totalorder %s18, 0
    %p159 = por %p157, %p158
    %p160 = scmp.ne.s32.totalorder %s146, %s147
    %p161 = scmp.eq.s32.totalorder %s19, 1
    %p162 = por %p160, %p161
    %p164 = scmp.ne.s32.totalorder %s147, %s163
    %p165 = scmp.eq.s32.totalorder %s19, 0
    %p166 = por %p164, %p165
    %s167 = ssub.s32 %s13, %s20
    %p168 = scmp.eq.s32.totalorder %s167, 0
    %s170 = sadd.s32 %s169, 1
    %s171 = scalar_select %p168, %s169, %s170
    %p174 = pneg %p168
    %p175 = scmp.eq.s32.totalorder %s13, 1
    %p176 = por %p174, %p175
    %p177 = scmp.ne.s32.totalorder %s169, %s172
    %p178 = scmp.eq.s32.totalorder %s13, 0
    %p179 = por %p177, %p178
    %p180 = scmp.ne.s32.totalorder %s169, %s172
    %p181 = scmp.eq.s32.totalorder %s18, 1
    %p182 = por %p180, %p181
    %p183 = scmp.ne.s32.totalorder %s172, %s173
    %p184 = scmp.eq.s32.totalorder %s18, 0
    %p185 = por %p183, %p184
    %p186 = scmp.ne.s32.totalorder %s172, %s173
    %p187 = scmp.eq.s32.totalorder %s19, 1
    %p188 = por %p186, %p187
    %p190 = scmp.ne.s32.totalorder %s173, %s189
    %p191 = scmp.eq.s32.totalorder %s19, 0
    %p192 = por %p190, %p191
    %p193 = scmp.le.s32.totalorder 1, %s13
    %p194 = scmp.lt.s32.totalorder %s13, 3
    %p195 = pnand %p193, %p194
    %p196 = pneg %p195
    // Predicated region
    $region9: #{restnet_down_block.6} parent=5 // pred_check
      _
    $region10: #{restnet_down_block.6} parent=5 // pred_check_branch
      %198 = sbr.rel (%p195) target = $region12
    $region11: #{restnet_down_block.6} parent=5 // pred_region
      %s199 = ssub.s32 %s13, 1
      // Predicated region
      $region13: #{restnet_down_block.6} parent=11 // pred_check
        %p200 = pneg %p86
      $region14: #{restnet_down_block.6} parent=11 // pred_check_branch
        %202 = sbr.rel (%p200) target = $region16
      $region15: #{restnet_down_block.6} parent=11 // pred_region
        _
      $region16: #{restnet_down_block.6} parent=11 // pred_fallthru
        _
      // Predicated region
      $region17: #{restnet_down_block.6} parent=11 // pred_check
        %p203 = pneg %p107
      $region18: #{restnet_down_block.6} parent=11 // pred_check_branch
        %205 = sbr.rel (%p203) target = $region20
      $region19: #{restnet_down_block.6} parent=11 // pred_region
        _
      $region20: #{restnet_down_block.6} parent=11 // pred_fallthru
        _
    $region12: #{restnet_down_block.6} parent=5 // pred_fallthru
      _
    %p206 = scmp.lt.s32.totalorder %s13, 2
    // Predicated region
    $region21: #{restnet_down_block.6} parent=5 // pred_check
      %p207 = pneg %p206
    $region22: #{restnet_down_block.6} parent=5 // pred_check_branch
      %209 = sbr.rel (%p207) target = $region24
    $region23: #{restnet_down_block.6} parent=5 // pred_region
      // Predicated region
      $region25: #{restnet_down_block.6} parent=23 // pred_check
        %p210 = pneg %p33
      $region26: #{restnet_down_block.6} parent=23 // pred_check_branch
        %212 = sbr.rel (%p210) target = $region28
      $region27: #{restnet_down_block.6} parent=23 // pred_region
        %s213 = smul.u32 8, %s13
        %p214 = scmp.lt.s32.totalorder %s213, 15
        %s215 = scalar_select %p214, %s213, 15
        %s216 = smul.addr %s215, 4
        %s217 = scalar_lea.vmem %s0, %s216
        %s218 = smul.u32 8, %s13
      $region28: #{restnet_down_block.6} parent=23 // pred_fallthru
        _
      // Predicated region
      $region29: #{restnet_down_block.6} parent=23 // pred_check
        %p219 = pneg %p59
      $region30: #{restnet_down_block.6} parent=23 // pred_check_branch
        %221 = sbr.rel (%p219) target = $region32
      $region31: #{restnet_down_block.6} parent=23 // pred_region
        %s222 = smul.u32 8, %s13
        %p223 = scmp.lt.s32.totalorder %s222, 15
        %s224 = scalar_select %p223, %s222, 15
        %s225 = smul.addr %s224, 4
        %s226 = scalar_lea.vmem %s1, %s225
        %s227 = smul.u32 8, %s13
      $region32: #{restnet_down_block.6} parent=23 // pred_fallthru
        _
    $region24: #{restnet_down_block.6} parent=5 // pred_fallthru
      _
    %p228 = scmp.le.s32.totalorder 1, %s13
    %p229 = scmp.lt.s32.totalorder %s13, 3
    %p230 = pnand %p228, %p229
    %p231 = pneg %p230
    // Predicated region
    $region33: #{restnet_down_block.6} parent=5 // pred_check
      _
    $region34: #{restnet_down_block.6} parent=5 // pred_check_branch
      %233 = sbr.rel (%p230) target = $region36
    $region35: #{restnet_down_block.6} parent=5 // pred_region
      %s234 = ssub.s32 %s13, 1
      %s235 = smul.u32 8, %s18
      %p236 = scmp.lt.s32.totalorder %s235, 15
      %s237 = scalar_select %p236, %s235, 15
      %s238 = smul.addr %s237, 4
      %s239 = scalar_lea.vmem %s0, %s238
      %p240 = pneg %p39
      %p241 = pneg %p36
      %s242 = smul.u32 8, %s18
      %p243 = scmp.lt.s32.totalorder %s242, 15
      %s244 = scalar_select %p243, %s242, 15
      %s245 = smul.addr %s244, 4
      %s246 = scalar_lea.vmem %s1, %s245
      %p247 = pneg %p65
      %p248 = pneg %p62
      %p249 = pneg %p86
      %p250 = pneg %p83
      %p251 = pneg %p107
      %p252 = pneg %p104
      %p253 = pneg %p133
      %p254 = pneg %p130
      %s255 = smul.u32 8, %s18
      %p256 = scmp.lt.s32.totalorder %s255, 15
      %s257 = scalar_select %p256, %s255, 15
      %s258 = smul.addr %s257, 4
      %s259 = scalar_lea.vmem %s4, %s258
      %p260 = pneg %p159
      %p261 = pneg %p156
      %p262 = scmp.lt.s32.totalorder %s18, 1
      %s263 = scalar_select %p262, %s18, 1
      %s264 = smul.addr %s263, 8
      %s265 = scalar_lea.vmem %s5, %s264
      %p266 = pneg %p185
      %p267 = pneg %p182
      %p268 = scmp.lt.s32.totalorder %s18, 1
      %s269 = scalar_select %p268, %s18, 1
      %s270 = smul.addr %s269, 8
      %s271 = scalar_lea.vmem %s6, %s270
      %s272 = smul.u32 8, %s18
      %p273 = scmp.lt.s32.totalorder %s272, 15
      %s274 = scalar_select %p273, %s272, 15
      %s275 = smul.addr %s274, 4
      %s276 = scalar_lea.vmem %s0, %s275
      %s277 = smul.u32 8, %s18
      %s278 = smul.u32 8, %s18
      %p279 = scmp.lt.s32.totalorder %s278, 15
      %s280 = scalar_select %p279, %s278, 15
      %s281 = smul.addr %s280, 4
      %s282 = scalar_lea.vmem %s1, %s281
      %s283 = smul.u32 8, %s18
      %s284 = smul.u32 8, %s18
      %p285 = scmp.lt.s32.totalorder %s284, 15
      %s286 = scalar_select %p285, %s284, 15
      %s287 = smul.addr %s286, 4
      %s288 = scalar_lea.vmem %s4, %s287
      %s289 = smul.u32 8, %s18
      %p290 = scmp.lt.s32.totalorder %s18, 1
      %s291 = scalar_select %p290, %s18, 1
      %s292 = smul.addr %s291, 8
      %s293 = scalar_lea.vmem %s5, %s292
      %p294 = scmp.lt.s32.totalorder %s18, 1
      %s295 = scalar_select %p294, %s18, 1
      %s296 = smul.addr %s295, 8
      %s297 = scalar_lea.vmem %s6, %s296
      %v299 = vld [vmem:[%s276] sm:$0xf]
      %v300 = vld [vmem:[%s276 + $0x4] sm:$0xf]
      %v301 = vld [vmem:[%s276 + $0x8] sm:$0xf]
      %v302 = vld [vmem:[%s276 + $0xc] sm:$0xf]
      %v303 = vld [vmem:[%s276 + $0x10] sm:$0xf]
      %v304 = vld [vmem:[%s276 + $0x14] sm:$0xf]
      %v305 = vld [vmem:[%s276 + $0x18] sm:$0xf]
      %v306 = vld [vmem:[%s276 + $0x1c] sm:$0xf]
      %v307 = vld [vmem:[%s2] sm:$0xf]
      %v308 = vld [vmem:[%s2 + $0x4] sm:$0xf]
      %v309 = vld [vmem:[%s2 + $0x8] sm:$0xf]
      %v310 = vld [vmem:[%s2 + $0xc] sm:$0xf]
      %v311 = vld [vmem:[%s2 + $0x10] sm:$0xf]
      %v312 = vld [vmem:[%s2 + $0x14] sm:$0xf]
      %v313 = vld [vmem:[%s2 + $0x18] sm:$0xf]
      %v314 = vld [vmem:[%s2 + $0x1c] sm:$0xf]
      %v315 = vld [vmem:[%s2 + $0x20] sm:$0xf]
      %v316 = vld [vmem:[%s2 + $0x24] sm:$0xf]
      %v317 = vld [vmem:[%s2 + $0x28] sm:$0xf]
      %v318 = vld [vmem:[%s2 + $0x2c] sm:$0xf]
      %v319 = vld [vmem:[%s2 + $0x30] sm:$0xf]
      %v320 = vld [vmem:[%s2 + $0x34] sm:$0xf]
      %v321 = vld [vmem:[%s2 + $0x38] sm:$0xf]
      %v322 = vld [vmem:[%s2 + $0x3c] sm:$0xf]
      %v331 = vunpack.c.l.b16 %v299
      %v332 = vunpack.c.l.b16 %v300
      %v333 = vunpack.c.l.b16 %v301
      %v334 = vunpack.c.l.b16 %v302
      %v335 = vunpack.c.l.b16 %v303
      %v336 = vunpack.c.l.b16 %v304
      %v337 = vunpack.c.l.b16 %v305
      %v338 = vunpack.c.l.b16 %v306
      %v339 = vpack.c.b16 %v332, %v331
      %v340 = vpack.c.b16 %v334, %v333
      %v341 = vpack.c.b16 %v336, %v335
      %v342 = vpack.c.b16 %v338, %v337
      %v363 = vunpack.c.l.b16 %v307
      %v364 = vunpack.c.l.b16 %v308
      %v365 = vunpack.c.l.b16 %v309
      %v366 = vunpack.c.l.b16 %v310
      %v367 = vunpack.c.l.b16 %v311
      %v368 = vunpack.c.l.b16 %v312
      %v369 = vunpack.c.l.b16 %v313
      %v370 = vunpack.c.l.b16 %v314
      %v371 = vunpack.c.l.b16 %v315
      %v372 = vunpack.c.l.b16 %v316
      %v373 = vunpack.c.l.b16 %v317
      %v374 = vunpack.c.l.b16 %v318
      %v375 = vunpack.c.l.b16 %v319
      %v376 = vunpack.c.l.b16 %v320
      %v377 = vunpack.c.l.b16 %v321
      %v378 = vunpack.c.l.b16 %v322
      %v379 = vpack.c.b16 %v364, %v363
      %v380 = vpack.c.b16 %v366, %v365
      %v381 = vpack.c.b16 %v368, %v367
      %v382 = vpack.c.b16 %v370, %v369
      %v383 = vpack.c.b16 %v372, %v371
      %v384 = vpack.c.b16 %v374, %v373
      %v385 = vpack.c.b16 %v376, %v375
      %v386 = vpack.c.b16 %v378, %v377
      %395 = vmatprep.subr.bf16.mxu0 0
      %396 = vmatpush1.bf16.msra.mxu0 %v379
      %397 = vmatprep.subr.bf16.mxu0 0
      %398 = vmatpush1.bf16.msra.mxu0 %v380
      %399 = vmatprep.subr.bf16.mxu0 0
      %400 = vmatpush1.bf16.msra.mxu0 %v381
      %401 = vmatprep.subr.bf16.mxu0 0
      %402 = vmatpush1.bf16.msra.mxu0 %v382
      %403 = vmatprep.subr.bf16.mxu0 0
      %404 = vmatpush1.bf16.msra.mxu0 %v383
      %405 = vmatprep.subr.bf16.mxu0 0
      %406 = vmatpush1.bf16.msra.mxu0 %v384
      %407 = vmatprep.subr.bf16.mxu0 0
      %408 = vmatpush1.bf16.msra.mxu0 %v385
      %409 = vmatprep.subr.bf16.mxu0 0
      %410 = vmatpush1.bf16.msra.mxu0 %v386
      %411 = vmatprep.subr.bf16.mxu0 0
      %412 = vmatpush1.bf16.msra.mxu0 0
      %413 = vmatprep.subr.bf16.mxu0 0
      %414 = vmatpush1.bf16.msra.mxu0 0
      %415 = vmatprep.subr.bf16.mxu0 0
      %416 = vmatpush1.bf16.msra.mxu0 0
      %417 = vmatprep.subr.bf16.mxu0 0
      %418 = vmatpush1.bf16.msra.mxu0 0
      %419 = vmatprep.subr.bf16.mxu0 0
      %420 = vmatpush1.bf16.msra.mxu0 0
      %421 = vmatprep.subr.bf16.mxu0 0
      %422 = vmatpush1.bf16.msra.mxu0 0
      %423 = vmatprep.subr.bf16.mxu0 0
      %424 = vmatpush1.bf16.msra.mxu0 0
      %425 = vmatprep.subr.bf16.mxu0 0
      %426 = vmatpush1.bf16.msra.mxu0 0
      %427 = vmatprep.mubr.bf16.mxu0 0
      %428 = vmatmul.mubr.bf16.gmra.mrb[0].mxu0 %v339
      %v429 = vpop.f32.mrb[0].mxu0
      %v430 = vadd.f32 0.0, %v429
      %v431 = vpop.f32.mrb[0].mxu0
      %v432 = vpop.f32.mrb[0].mxu0
      %v433 = vadd.f32 0.0, %v432
      %v434 = vpop.f32.mrb[0].mxu0
      %435 = vmatprep.mubr.bf16.mxu0 0
      %436 = vmatmul.mubr.bf16.gmra.mrb[0].mxu0 %v340
      %v437 = vpop.f32.mrb[0].mxu0
      %v438 = vadd.f32 0.0, %v437
      %v439 = vpop.f32.mrb[0].mxu0
      %v440 = vpop.f32.mrb[0].mxu0
      %v441 = vadd.f32 0.0, %v440
      %v442 = vpop.f32.mrb[0].mxu0
      %443 = vmatprep.mubr.bf16.mxu0 0
      %444 = vmatmul.mubr.bf16.gmra.mrb[0].mxu0 %v341
      %v445 = vpop.f32.mrb[0].mxu0
      %v446 = vadd.f32 0.0, %v445
      %v447 = vpop.f32.mrb[0].mxu0
      %v448 = vpop.f32.mrb[0].mxu0
      %v449 = vadd.f32 0.0, %v448
      %v450 = vpop.f32.mrb[0].mxu0
      %451 = vmatprep.mubr.bf16.mxu0 0
      %452 = vmatmul.mubr.bf16.gmra.mrb[0].mxu0 %v342
      %v453 = vpop.f32.mrb[0].mxu0
      %v454 = vadd.f32 0.0, %v453
      %v455 = vpop.f32.mrb[0].mxu0
      %v456 = vpop.f32.mrb[0].mxu0
      %v457 = vadd.f32 0.0, %v456
      %v458 = vpop.f32.mrb[0].mxu0
      %459 = vdwg.mxu0
      %v460 = vld [vmem:[%s282] sm:$0xf]
      %v461 = vld [vmem:[%s282 + $0x4] sm:$0xf]
      %v462 = vld [vmem:[%s282 + $0x8] sm:$0xf]
      %v463 = vld [vmem:[%s282 + $0xc] sm:$0xf]
      %v464 = vld [vmem:[%s282 + $0x10] sm:$0xf]
      %v465 = vld [vmem:[%s282 + $0x14] sm:$0xf]
      %v466 = vld [vmem:[%s282 + $0x18] sm:$0xf]
      %v467 = vld [vmem:[%s282 + $0x1c] sm:$0xf]
      %v468 = vld [vmem:[%s3] sm:$0xf]
      %v469 = vld [vmem:[%s3 + $0x4] sm:$0xf]
      %v470 = vld [vmem:[%s3 + $0x8] sm:$0xf]
      %v471 = vld [vmem:[%s3 + $0xc] sm:$0xf]
      %v472 = vld [vmem:[%s3 + $0x10] sm:$0xf]
      %v473 = vld [vmem:[%s3 + $0x14] sm:$0xf]
      %v474 = vld [vmem:[%s3 + $0x18] sm:$0xf]
      %v475 = vld [vmem:[%s3 + $0x1c] sm:$0xf]
      %v476 = vld [vmem:[%s3 + $0x20] sm:$0xf]
      %v477 = vld [vmem:[%s3 + $0x24] sm:$0xf]
      %v478 = vld [vmem:[%s3 + $0x28] sm:$0xf]
      %v479 = vld [vmem:[%s3 + $0x2c] sm:$0xf]
      %v480 = vld [vmem:[%s3 + $0x30] sm:$0xf]
      %v481 = vld [vmem:[%s3 + $0x34] sm:$0xf]
      %v482 = vld [vmem:[%s3 + $0x38] sm:$0xf]
      %v483 = vld [vmem:[%s3 + $0x3c] sm:$0xf]
      %v492 = vunpack.c.l.b16 %v460
      %v493 = vunpack.c.l.b16 %v461
      %v494 = vunpack.c.l.b16 %v462
      %v495 = vunpack.c.l.b16 %v463
      %v496 = vunpack.c.l.b16 %v464
      %v497 = vunpack.c.l.b16 %v465
      %v498 = vunpack.c.l.b16 %v466
      %v499 = vunpack.c.l.b16 %v467
      %v500 = vpack.c.b16 %v493, %v492
      %v501 = vpack.c.b16 %v495, %v494
      %v502 = vpack.c.b16 %v497, %v496
      %v503 = vpack.c.b16 %v499, %v498
      %v524 = vunpack.c.l.b16 %v468
      %v525 = vunpack.c.l.b16 %v469
      %v526 = vunpack.c.l.b16 %v470
      %v527 = vunpack.c.l.b16 %v471
      %v528 = vunpack.c.l.b16 %v472
      %v529 = vunpack.c.l.b16 %v473
      %v530 = vunpack.c.l.b16 %v474
      %v531 = vunpack.c.l.b16 %v475
      %v532 = vunpack.c.l.b16 %v476
      %v533 = vunpack.c.l.b16 %v477
      %v534 = vunpack.c.l.b16 %v478
      %v535 = vunpack.c.l.b16 %v479
      %v536 = vunpack.c.l.b16 %v480
      %v537 = vunpack.c.l.b16 %v481
      %v538 = vunpack.c.l.b16 %v482
      %v539 = vunpack.c.l.b16 %v483
      %v540 = vpack.c.b16 %v525, %v524
      %v541 = vpack.c.b16 %v527, %v526
      %v542 = vpack.c.b16 %v529, %v528
      %v543 = vpack.c.b16 %v531, %v530
      %v544 = vpack.c.b16 %v533, %v532
      %v545 = vpack.c.b16 %v535, %v534
      %v546 = vpack.c.b16 %v537, %v536
      %v547 = vpack.c.b16 %v539, %v538
      %556 = vmatprep.subr.bf16.mxu0 0
      %557 = vmatpush1.bf16.msra.mxu0 %v540
      %558 = vmatprep.subr.bf16.mxu0 0
      %559 = vmatpush1.bf16.msra.mxu0 %v541
      %560 = vmatprep.subr.bf16.mxu0 0
      %561 = vmatpush1.bf16.msra.mxu0 %v542
      %562 = vmatprep.subr.bf16.mxu0 0
      %563 = vmatpush1.bf16.msra.mxu0 %v543
      %564 = vmatprep.subr.bf16.mxu0 0
      %565 = vmatpush1.bf16.msra.mxu0 %v544
      %566 = vmatprep.subr.bf16.mxu0 0
      %567 = vmatpush1.bf16.msra.mxu0 %v545
      %568 = vmatprep.subr.bf16.mxu0 0
      %569 = vmatpush1.bf16.msra.mxu0 %v546
      %570 = vmatprep.subr.bf16.mxu0 0
      %571 = vmatpush1.bf16.msra.mxu0 %v547
      %572 = vmatprep.subr.bf16.mxu0 0
      %573 = vmatpush1.bf16.msra.mxu0 0
      %574 = vmatprep.subr.bf16.mxu0 0
      %575 = vmatpush1.bf16.msra.mxu0 0
      %576 = vmatprep.subr.bf16.mxu0 0
      %577 = vmatpush1.bf16.msra.mxu0 0
      %578 = vmatprep.subr.bf16.mxu0 0
      %579 = vmatpush1.bf16.msra.mxu0 0
      %580 = vmatprep.subr.bf16.mxu0 0
      %581 = vmatpush1.bf16.msra.mxu0 0
      %582 = vmatprep.subr.bf16.mxu0 0
      %583 = vmatpush1.bf16.msra.mxu0 0
      %584 = vmatprep.subr.bf16.mxu0 0
      %585 = vmatpush1.bf16.msra.mxu0 0
      %586 = vmatprep.subr.bf16.mxu0 0
      %587 = vmatpush1.bf16.msra.mxu0 0
      %588 = vmatprep.mubr.bf16.mxu0 0
      %589 = vmatmul.mubr.bf16.gmra.mrb[0].mxu0 %v500
      %v590 = vpop.f32.mrb[0].mxu0
      %v591 = vadd.f32 0.0, %v590
      %v592 = vpop.f32.mrb[0].mxu0
      %v593 = vpop.f32.mrb[0].mxu0
      %v594 = vadd.f32 0.0, %v593
      %v595 = vpop.f32.mrb[0].mxu0
      %596 = vmatprep.mubr.bf16.mxu0 0
      %597 = vmatmul.mubr.bf16.gmra.mrb[0].mxu0 %v501
      %v598 = vpop.f32.mrb[0].mxu0
      %v599 = vadd.f32 0.0, %v598
      %v600 = vpop.f32.mrb[0].mxu0
      %v601 = vpop.f32.mrb[0].mxu0
      %v602 = vadd.f32 0.0, %v601
      %v603 = vpop.f32.mrb[0].mxu0
      %604 = vmatprep.mubr.bf16.mxu0 0
      %605 = vmatmul.mubr.bf16.gmra.mrb[0].mxu0 %v502
      %v606 = vpop.f32.mrb[0].mxu0
      %v607 = vadd.f32 0.0, %v606
      %v608 = vpop.f32.mrb[0].mxu0
      %v609 = vpop.f32.mrb[0].mxu0
      %v610 = vadd.f32 0.0, %v609
      %v611 = vpop.f32.mrb[0].mxu0
      %612 = vmatprep.mubr.bf16.mxu0 0
      %613 = vmatmul.mubr.bf16.gmra.mrb[0].mxu0 %v503
      %v614 = vpop.f32.mrb[0].mxu0
      %v615 = vadd.f32 0.0, %v614
      %v616 = vpop.f32.mrb[0].mxu0
      %v617 = vpop.f32.mrb[0].mxu0
      %v618 = vadd.f32 0.0, %v617
      %v619 = vpop.f32.mrb[0].mxu0
      %620 = vdwg.mxu0
      %v621 = vpack.c.bf16 %v433, %v430
      %v622 = vpack.c.bf16 %v441, %v438
      %v623 = vpack.c.bf16 %v449, %v446
      %v624 = vpack.c.bf16 %v457, %v454
      %v629 = vunpack.c.l.b16 %v621
      %v630 = vunpack.c.h.b16 %v621
      %v631 = vunpack.c.l.b16 %v622
      %v632 = vunpack.c.h.b16 %v622
      %v633 = vunpack.c.l.b16 %v623
      %v634 = vunpack.c.h.b16 %v623
      %v635 = vunpack.c.l.b16 %v624
      %v636 = vunpack.c.h.b16 %v624
      %v637 = vpack.c.b16 %v629, %v629
      %v638 = vpack.c.b16 %v630, %v630
      %v639 = vpack.c.b16 %v631, %v631
      %v640 = vpack.c.b16 %v632, %v632
      %v641 = vpack.c.b16 %v633, %v633
      %v642 = vpack.c.b16 %v634, %v634
      %v643 = vpack.c.b16 %v635, %v635
      %v644 = vpack.c.b16 %v636, %v636
      %653 = vst [vmem:[%s288] sm:$0xf] %v637
      %654 = vst [vmem:[%s288 + $0x4] sm:$0xf] %v638
      %655 = vst [vmem:[%s288 + $0x8] sm:$0xf] %v639
      %656 = vst [vmem:[%s288 + $0xc] sm:$0xf] %v640
      %657 = vst [vmem:[%s288 + $0x10] sm:$0xf] %v641
      %658 = vst [vmem:[%s288 + $0x14] sm:$0xf] %v642
      %659 = vst [vmem:[%s288 + $0x18] sm:$0xf] %v643
      %660 = vst [vmem:[%s288 + $0x1c] sm:$0xf] %v644
      %661 = vst [vmem:[%s293] sm:$0xff] 0.0
      %v662 = vadd.f32 %v430, %v433
      %v663 = vadd.f32 %v662, %v438
      %v664 = vadd.f32 %v663, %v441
      %v665 = vadd.f32 %v664, %v446
      %v666 = vadd.f32 %v665, %v449
      %v667 = vadd.f32 %v666, %v454
      %v668 = vadd.f32 %v667, %v457
      %v669 = vrot.slane %v668, 4
      %v670 = vadd.f32 %v668, %v669
      %v671 = vrot.slane %v670, 2
      %v672 = vadd.f32 %v670, %v671
      %v673 = vrot.slane %v672, 1
      %v674 = vadd.f32 %v672, %v673
      %675 = vst [vmem:[%s293] sm:$0x1] %v674
      %v676 = vmul.f32 %v430, %v430
      %v677 = vmul.f32 %v433, %v433
      %v678 = vmul.f32 %v438, %v438
      %v679 = vmul.f32 %v441, %v441
      %v680 = vmul.f32 %v446, %v446
      %v681 = vmul.f32 %v449, %v449
      %v682 = vmul.f32 %v454, %v454
      %v683 = vmul.f32 %v457, %v457
      %v684 = vadd.f32 %v676, %v677
      %v685 = vadd.f32 %v684, %v678
      %v686 = vadd.f32 %v685, %v679
      %v687 = vadd.f32 %v686, %v680
      %v688 = vadd.f32 %v687, %v681
      %v689 = vadd.f32 %v688, %v682
      %v690 = vadd.f32 %v689, %v683
      %v691 = vrot.slane %v690, 4
      %v692 = vadd.f32 %v690, %v691
      %v693 = vrot.slane %v692, 2
      %v694 = vadd.f32 %v692, %v693
      %v695 = vrot.slane %v694, 1
      %v696 = vadd.f32 %v694, %v695
      %697 = vst [vmem:[%s293 + $0x1] sm:$0x1] %v696
      %698 = vst [vmem:[%s297] sm:$0xff] 0.0
      %v699 = vadd.f32 %v591, %v594
      %v700 = vadd.f32 %v699, %v599
      %v701 = vadd.f32 %v700, %v602
      %v702 = vadd.f32 %v701, %v607
      %v703 = vadd.f32 %v702, %v610
      %v704 = vadd.f32 %v703, %v615
      %v705 = vadd.f32 %v704, %v618
      %v706 = vrot.slane %v705, 4
      %v707 = vadd.f32 %v705, %v706
      %v708 = vrot.slane %v707, 2
      %v709 = vadd.f32 %v707, %v708
      %v710 = vrot.slane %v709, 1
      %v711 = vadd.f32 %v709, %v710
      %712 = vst [vmem:[%s297] sm:$0x1] %v711
      %v713 = vmul.f32 %v591, %v591
      %v714 = vmul.f32 %v594, %v594
      %v715 = vmul.f32 %v599, %v599
      %v716 = vmul.f32 %v602, %v602
      %v717 = vmul.f32 %v607, %v607
      %v718 = vmul.f32 %v610, %v610
      %v719 = vmul.f32 %v615, %v615
      %v720 = vmul.f32 %v618, %v618
      %v721 = vadd.f32 %v713, %v714
      %v722 = vadd.f32 %v721, %v715
      %v723 = vadd.f32 %v722, %v716
      %v724 = vadd.f32 %v723, %v717
      %v725 = vadd.f32 %v724, %v718
      %v726 = vadd.f32 %v725, %v719
      %v727 = vadd.f32 %v726, %v720
      %v728 = vrot.slane %v727, 4
      %v729 = vadd.f32 %v727, %v728
      %v730 = vrot.slane %v729, 2
      %v731 = vadd.f32 %v729, %v730
      %v732 = vrot.slane %v731, 1
      %v733 = vadd.f32 %v731, %v732
      %734 = vst [vmem:[%s297 + $0x1] sm:$0x1] %v733
      %s735 = smul.u32 8, %s18
      %p736 = scmp.lt.s32.totalorder %s735, 15
      %s737 = scalar_select %p736, %s735, 15
      %s738 = smul.addr %s737, 4
      %s739 = scalar_lea.vmem %s4, %s738
      %p740 = scmp.lt.s32.totalorder %s18, 1
      %s741 = scalar_select %p740, %s18, 1
      %s742 = smul.addr %s741, 8
      %s743 = scalar_lea.vmem %s5, %s742
      %p744 = scmp.lt.s32.totalorder %s18, 1
      %s745 = scalar_select %p744, %s18, 1
      %s746 = smul.addr %s745, 8
      %s747 = scalar_lea.vmem %s6, %s746
      // Predicated region
      $region37: #{restnet_down_block.6} parent=35 // pred_check
        %p748 = pneg %p130
      $region38: #{restnet_down_block.6} parent=35 // pred_check_branch
        %750 = sbr.rel (%p748) target = $region40
      $region39: #{restnet_down_block.6} parent=35 // pred_region
        %s751 = smul.u32 8, %s18
      $region40: #{restnet_down_block.6} parent=35 // pred_fallthru
        _
      // Predicated region
      $region41: #{restnet_down_block.6} parent=35 // pred_check
        %p752 = pneg %p156
      $region42: #{restnet_down_block.6} parent=35 // pred_check_branch
        %754 = sbr.rel (%p752) target = $region44
      $region43: #{restnet_down_block.6} parent=35 // pred_region
        _
      $region44: #{restnet_down_block.6} parent=35 // pred_fallthru
        _
      // Predicated region
      $region45: #{restnet_down_block.6} parent=35 // pred_check
        %p755 = pneg %p182
      $region46: #{restnet_down_block.6} parent=35 // pred_check_branch
        %757 = sbr.rel (%p755) target = $region48
      $region47: #{restnet_down_block.6} parent=35 // pred_region
        _
      $region48: #{restnet_down_block.6} parent=35 // pred_fallthru
        _
    $region36: #{restnet_down_block.6} parent=5 // pred_fallthru
      _
    %p758 = scmp.le.s32.totalorder 2, %s13
    // Predicated region
    $region49: #{restnet_down_block.6} parent=5 // pred_check
      %p759 = pneg %p758
    $region50: #{restnet_down_block.6} parent=5 // pred_check_branch
      %761 = sbr.rel (%p759) target = $region52
    $region51: #{restnet_down_block.6} parent=5 // pred_region
      %s762 = ssub.s32 %s13, 2
      // Predicated region
      $region53: #{restnet_down_block.6} parent=51 // pred_check
        %p763 = pneg %p136
      $region54: #{restnet_down_block.6} parent=51 // pred_check_branch
        %765 = sbr.rel (%p763) target = $region56
      $region55: #{restnet_down_block.6} parent=51 // pred_region
        %s766 = smul.u32 8, %s19
        %p767 = scmp.lt.s32.totalorder %s766, 15
        %s768 = scalar_select %p767, %s766, 15
        %s769 = smul.addr %s768, 4
        %s770 = scalar_lea.vmem %s4, %s769
      $region56: #{restnet_down_block.6} parent=51 // pred_fallthru
        _
      // Predicated region
      $region57: #{restnet_down_block.6} parent=51 // pred_check
        %p771 = pneg %p162
      $region58: #{restnet_down_block.6} parent=51 // pred_check_branch
        %773 = sbr.rel (%p771) target = $region60
      $region59: #{restnet_down_block.6} parent=51 // pred_region
        %p774 = scmp.lt.s32.totalorder %s19, 1
        %s775 = scalar_select %p774, %s19, 1
        %s776 = smul.addr %s775, 8
        %s777 = scalar_lea.vmem %s5, %s776
      $region60: #{restnet_down_block.6} parent=51 // pred_fallthru
        _
      // Predicated region
      $region61: #{restnet_down_block.6} parent=51 // pred_check
        %p778 = pneg %p188
      $region62: #{restnet_down_block.6} parent=51 // pred_check_branch
        %780 = sbr.rel (%p778) target = $region64
      $region63: #{restnet_down_block.6} parent=51 // pred_region
        %p781 = scmp.lt.s32.totalorder %s19, 1
        %s782 = scalar_select %p781, %s19, 1
        %s783 = smul.addr %s782, 8
        %s784 = scalar_lea.vmem %s6, %s783
      $region64: #{restnet_down_block.6} parent=51 // pred_fallthru
        _
    $region52: #{restnet_down_block.6} parent=5 // pred_fallthru
      _
  $region6: #{restnet_down_block.6} parent=0 // loop_footer
    %s17 = sadd.s32 1, %s13
  $region7: #{restnet_down_block.6} parent=0 // loop_footer_branch
    %12 = sbr.rel target = $region3
  $region8: #{restnet_down_block.6} parent=0 // loop_exit
    _

// kernel: restnet_down_block.7
$region0: #{restnet_down_block.7}
  #allocation0 [shape = 'u32[]', space=smem, size = 0x4, offset = 0x4, fixed_abs, tag = 'smem constant byte address 0x4 - core index']
  #allocation1 [shape = 'u32[144,128]{1,0:T(1,128)}', space=vmem, size = 0x12000, scoped, tag = 'internal scratch']
  %s0 = inlined_call_operand.vmem [shape: bf16[128,128], index: 0, kind: input, shape index: {}]
  %s1 = inlined_call_operand.vmem [shape: bf16[128,128], index: 1, kind: input, shape index: {}]
  %s2 = inlined_call_operand.vmem [shape: bf16[128,128], index: 2, kind: input, shape index: {}]
  %s3 = inlined_call_operand.vmem [shape: f32[1,128], index: 3, kind: input, shape index: {}]
  %s4 = inlined_call_operand.vmem [shape: f32[1,128], index: 4, kind: input, shape index: {}]
  %s5 = inlined_call_operand.vmem [shape: f32[1,128], index: 5, kind: input, shape index: {}]
  %s6 = inlined_call_operand.vmem [shape: f32[128,128], index: 6, kind: output, shape index: {}]
  %s7 = sld [smem:[#allocation0]]
  $region34: #{restnet_down_block.7} parent=0
    _
  %s9 = ssub.s32 1, %s7
  %s10 = scalar_select 0, %s9, %s7
  // Predicated region
  $region2: #{restnet_down_block.7} parent=0 // pred_check
    _
  $region3: #{restnet_down_block.7} parent=0 // pred_check_branch
    %12 = sbr.rel (0) target = $region5
  $region4: #{restnet_down_block.7} parent=0 // pred_region
    _
  $region5: #{restnet_down_block.7} parent=0 // pred_fallthru
    _
  // Predicated region
  $region6: #{restnet_down_block.7} parent=0 // pred_check
    _
  $region7: #{restnet_down_block.7} parent=0 // pred_check_branch
    %14 = sbr.rel (0) target = $region9
  $region8: #{restnet_down_block.7} parent=0 // pred_region
    _
  $region9: #{restnet_down_block.7} parent=0 // pred_fallthru
    _
  // Predicated region
  $region10: #{restnet_down_block.7} parent=0 // pred_check
    _
  $region11: #{restnet_down_block.7} parent=0 // pred_check_branch
    %16 = sbr.rel (0) target = $region13
  $region12: #{restnet_down_block.7} parent=0 // pred_region
    _
  $region13: #{restnet_down_block.7} parent=0 // pred_fallthru
    _
  // Predicated region
  $region14: #{restnet_down_block.7} parent=0 // pred_check
    _
  $region15: #{restnet_down_block.7} parent=0 // pred_check_branch
    %18 = sbr.rel (0) target = $region17
  $region16: #{restnet_down_block.7} parent=0 // pred_region
    _
  $region17: #{restnet_down_block.7} parent=0 // pred_fallthru
    _
  // Predicated region
  $region18: #{restnet_down_block.7} parent=0 // pred_check
    _
  $region19: #{restnet_down_block.7} parent=0 // pred_check_branch
    %20 = sbr.rel (0) target = $region21
  $region20: #{restnet_down_block.7} parent=0 // pred_region
    _
  $region21: #{restnet_down_block.7} parent=0 // pred_fallthru
    _
  // Predicated region
  $region22: #{restnet_down_block.7} parent=0 // pred_check
    _
  $region23: #{restnet_down_block.7} parent=0 // pred_check_branch
    %22 = sbr.rel (0) target = $region25
  $region24: #{restnet_down_block.7} parent=0 // pred_region
    _
  $region25: #{restnet_down_block.7} parent=0 // pred_fallthru
    _
  %v24 = vld [vmem:[%s1] sm:$0xf]
  %v25 = vld [vmem:[%s1 + $0x4] sm:$0xf]
  %v26 = vld [vmem:[%s1 + $0x8] sm:$0xf]
  %v27 = vld [vmem:[%s1 + $0xc] sm:$0xf]
  %v28 = vld [vmem:[%s1 + $0x10] sm:$0xf]
  %v29 = vld [vmem:[%s1 + $0x14] sm:$0xf]
  %v30 = vld [vmem:[%s1 + $0x18] sm:$0xf]
  %v31 = vld [vmem:[%s1 + $0x1c] sm:$0xf]
  %v32 = vld [vmem:[%s1 + $0x20] sm:$0xf]
  %v33 = vld [vmem:[%s1 + $0x24] sm:$0xf]
  %v34 = vld [vmem:[%s1 + $0x28] sm:$0xf]
  %v35 = vld [vmem:[%s1 + $0x2c] sm:$0xf]
  %v36 = vld [vmem:[%s1 + $0x30] sm:$0xf]
  %v37 = vld [vmem:[%s1 + $0x34] sm:$0xf]
  %v38 = vld [vmem:[%s1 + $0x38] sm:$0xf]
  %v39 = vld [vmem:[%s1 + $0x3c] sm:$0xf]
  %v40 = vld [vmem:[%s2] sm:$0xf]
  %v41 = vld [vmem:[%s2 + $0x4] sm:$0xf]
  %v42 = vld [vmem:[%s2 + $0x8] sm:$0xf]
  %v43 = vld [vmem:[%s2 + $0xc] sm:$0xf]
  %v44 = vld [vmem:[%s2 + $0x10] sm:$0xf]
  %v45 = vld [vmem:[%s2 + $0x14] sm:$0xf]
  %v46 = vld [vmem:[%s2 + $0x18] sm:$0xf]
  %v47 = vld [vmem:[%s2 + $0x1c] sm:$0xf]
  %v48 = vld [vmem:[%s2 + $0x20] sm:$0xf]
  %v49 = vld [vmem:[%s2 + $0x24] sm:$0xf]
  %v50 = vld [vmem:[%s2 + $0x28] sm:$0xf]
  %v51 = vld [vmem:[%s2 + $0x2c] sm:$0xf]
  %v52 = vld [vmem:[%s2 + $0x30] sm:$0xf]
  %v53 = vld [vmem:[%s2 + $0x34] sm:$0xf]
  %v54 = vld [vmem:[%s2 + $0x38] sm:$0xf]
  %v55 = vld [vmem:[%s2 + $0x3c] sm:$0xf]
  %v72 = vunpack.c.l.b16 %v24
  %v73 = vunpack.c.l.b16 %v25
  %v74 = vunpack.c.l.b16 %v26
  %v75 = vunpack.c.l.b16 %v27
  %v76 = vunpack.c.l.b16 %v28
  %v77 = vunpack.c.l.b16 %v29
  %v78 = vunpack.c.l.b16 %v30
  %v79 = vunpack.c.l.b16 %v31
  %v80 = vunpack.c.l.b16 %v32
  %v81 = vunpack.c.l.b16 %v33
  %v82 = vunpack.c.l.b16 %v34
  %v83 = vunpack.c.l.b16 %v35
  %v84 = vunpack.c.l.b16 %v36
  %v85 = vunpack.c.l.b16 %v37
  %v86 = vunpack.c.l.b16 %v38
  %v87 = vunpack.c.l.b16 %v39
  %v88 = vpack.c.b16 %v73, %v72
  %v89 = vpack.c.b16 %v75, %v74
  %v90 = vpack.c.b16 %v77, %v76
  %v91 = vpack.c.b16 %v79, %v78
  %v92 = vpack.c.b16 %v81, %v80
  %v93 = vpack.c.b16 %v83, %v82
  %v94 = vpack.c.b16 %v85, %v84
  %v95 = vpack.c.b16 %v87, %v86
  %v120 = vunpack.c.l.b16 %v40
  %v121 = vunpack.c.l.b16 %v41
  %v122 = vunpack.c.l.b16 %v42
  %v123 = vunpack.c.l.b16 %v43
  %v124 = vunpack.c.l.b16 %v44
  %v125 = vunpack.c.l.b16 %v45
  %v126 = vunpack.c.l.b16 %v46
  %v127 = vunpack.c.l.b16 %v47
  %v128 = vunpack.c.l.b16 %v48
  %v129 = vunpack.c.l.b16 %v49
  %v130 = vunpack.c.l.b16 %v50
  %v131 = vunpack.c.l.b16 %v51
  %v132 = vunpack.c.l.b16 %v52
  %v133 = vunpack.c.l.b16 %v53
  %v134 = vunpack.c.l.b16 %v54
  %v135 = vunpack.c.l.b16 %v55
  %v136 = vpack.c.b16 %v121, %v120
  %v137 = vpack.c.b16 %v123, %v122
  %v138 = vpack.c.b16 %v125, %v124
  %v139 = vpack.c.b16 %v127, %v126
  %v140 = vpack.c.b16 %v129, %v128
  %v141 = vpack.c.b16 %v131, %v130
  %v142 = vpack.c.b16 %v133, %v132
  %v143 = vpack.c.b16 %v135, %v134
  %152 = vmatprep.subr.bf16.mxu0 0
  %153 = vmatpush1.bf16.msra.mxu0 %v136
  %154 = vmatprep.subr.bf16.mxu0 0
  %155 = vmatpush1.bf16.msra.mxu0 %v137
  %156 = vmatprep.subr.bf16.mxu0 0
  %157 = vmatpush1.bf16.msra.mxu0 %v138
  %158 = vmatprep.subr.bf16.mxu0 0
  %159 = vmatpush1.bf16.msra.mxu0 %v139
  %160 = vmatprep.subr.bf16.mxu0 0
  %161 = vmatpush1.bf16.msra.mxu0 %v140
  %162 = vmatprep.subr.bf16.mxu0 0
  %163 = vmatpush1.bf16.msra.mxu0 %v141
  %164 = vmatprep.subr.bf16.mxu0 0
  %165 = vmatpush1.bf16.msra.mxu0 %v142
  %166 = vmatprep.subr.bf16.mxu0 0
  %167 = vmatpush1.bf16.msra.mxu0 %v143
  %168 = vmatprep.subr.bf16.mxu0 0
  %169 = vmatpush1.bf16.msra.mxu0 0
  %170 = vmatprep.subr.bf16.mxu0 0
  %171 = vmatpush1.bf16.msra.mxu0 0
  %172 = vmatprep.subr.bf16.mxu0 0
  %173 = vmatpush1.bf16.msra.mxu0 0
  %174 = vmatprep.subr.bf16.mxu0 0
  %175 = vmatpush1.bf16.msra.mxu0 0
  %176 = vmatprep.subr.bf16.mxu0 0
  %177 = vmatpush1.bf16.msra.mxu0 0
  %178 = vmatprep.subr.bf16.mxu0 0
  %179 = vmatpush1.bf16.msra.mxu0 0
  %180 = vmatprep.subr.bf16.mxu0 0
  %181 = vmatpush1.bf16.msra.mxu0 0
  %182 = vmatprep.subr.bf16.mxu0 0
  %183 = vmatpush1.bf16.msra.mxu0 0
  %184 = vmatprep.mubr.bf16.mxu0 0
  %185 = vmatmul.mubr.bf16.gmra.mrb[0].mxu0 %v88
  %v186 = vpop.f32.mrb[0].mxu0
  %v187 = vadd.f32 0.0, %v186
  %v188 = vpop.f32.mrb[0].mxu0
  %v189 = vpop.f32.mrb[0].mxu0
  %v190 = vadd.f32 0.0, %v189
  %v191 = vpop.f32.mrb[0].mxu0
  %192 = vmatprep.mubr.bf16.mxu0 0
  %193 = vmatmul.mubr.bf16.gmra.mrb[0].mxu0 %v89
  %v194 = vpop.f32.mrb[0].mxu0
  %v195 = vadd.f32 0.0, %v194
  %v196 = vpop.f32.mrb[0].mxu0
  %v197 = vpop.f32.mrb[0].mxu0
  %v198 = vadd.f32 0.0, %v197
  %v199 = vpop.f32.mrb[0].mxu0
  %200 = vmatprep.mubr.bf16.mxu0 0
  %201 = vmatmul.mubr.bf16.gmra.mrb[0].mxu0 %v90
  %v202 = vpop.f32.mrb[0].mxu0
  %v203 = vadd.f32 0.0, %v202
  %v204 = vpop.f32.mrb[0].mxu0
  %v205 = vpop.f32.mrb[0].mxu0
  %v206 = vadd.f32 0.0, %v205
  %v207 = vpop.f32.mrb[0].mxu0
  %208 = vmatprep.mubr.bf16.mxu0 0
  %209 = vmatmul.mubr.bf16.gmra.mrb[0].mxu0 %v91
  %v210 = vpop.f32.mrb[0].mxu0
  %v211 = vadd.f32 0.0, %v210
  %v212 = vpop.f32.mrb[0].mxu0
  %v213 = vpop.f32.mrb[0].mxu0
  %v214 = vadd.f32 0.0, %v213
  %v215 = vpop.f32.mrb[0].mxu0
  %216 = vmatprep.mubr.bf16.mxu0 0
  %217 = vmatmul.mubr.bf16.gmra.mrb[0].mxu0 %v92
  %v218 = vpop.f32.mrb[0].mxu0
  %v219 = vadd.f32 0.0, %v218
  %v220 = vpop.f32.mrb[0].mxu0
  %v221 = vpop.f32.mrb[0].mxu0
  %v222 = vadd.f32 0.0, %v221
  %v223 = vpop.f32.mrb[0].mxu0
  %224 = vmatprep.mubr.bf16.mxu0 0
  %225 = vmatmul.mubr.bf16.gmra.mrb[0].mxu0 %v93
  %v226 = vpop.f32.mrb[0].mxu0
  %v227 = vadd.f32 0.0, %v226
  %v228 = vpop.f32.mrb[0].mxu0
  %v229 = vpop.f32.mrb[0].mxu0
  %v230 = vadd.f32 0.0, %v229
  %v231 = vpop.f32.mrb[0].mxu0
  %232 = vmatprep.mubr.bf16.mxu0 0
  %233 = vmatmul.mubr.bf16.gmra.mrb[0].mxu0 %v94
  %v234 = vpop.f32.mrb[0].mxu0
  %v235 = vadd.f32 0.0, %v234
  %v236 = vpop.f32.mrb[0].mxu0
  %v237 = vpop.f32.mrb[0].mxu0
  %v238 = vadd.f32 0.0, %v237
  %v239 = vpop.f32.mrb[0].mxu0
  %240 = vmatprep.mubr.bf16.mxu0 0
  %241 = vmatmul.mubr.bf16.gmra.mrb[0].mxu0 %v95
  %v242 = vpop.f32.mrb[0].mxu0
  %v243 = vadd.f32 0.0, %v242
  %v244 = vpop.f32.mrb[0].mxu0
  %v245 = vpop.f32.mrb[0].mxu0
  %v246 = vadd.f32 0.0, %v245
  %v247 = vpop.f32.mrb[0].mxu0
  %248 = vdwg.mxu0
  %v249 = vld [vmem:[%s0] sm:$0xf]
  %v250 = vld [vmem:[%s0 + $0x4] sm:$0xf]
  %v251 = vld [vmem:[%s0 + $0x8] sm:$0xf]
  %v252 = vld [vmem:[%s0 + $0xc] sm:$0xf]
  %v253 = vld [vmem:[%s0 + $0x10] sm:$0xf]
  %v254 = vld [vmem:[%s0 + $0x14] sm:$0xf]
  %v255 = vld [vmem:[%s0 + $0x18] sm:$0xf]
  %v256 = vld [vmem:[%s0 + $0x1c] sm:$0xf]
  %v257 = vld [vmem:[%s0 + $0x20] sm:$0xf]
  %v258 = vld [vmem:[%s0 + $0x24] sm:$0xf]
  %v259 = vld [vmem:[%s0 + $0x28] sm:$0xf]
  %v260 = vld [vmem:[%s0 + $0x2c] sm:$0xf]
  %v261 = vld [vmem:[%s0 + $0x30] sm:$0xf]
  %v262 = vld [vmem:[%s0 + $0x34] sm:$0xf]
  %v263 = vld [vmem:[%s0 + $0x38] sm:$0xf]
  %v264 = vld [vmem:[%s0 + $0x3c] sm:$0xf]
  %v265 = vunpack.c.l.bf16 %v249
  %v266 = vunpack.c.l.bf16 %v250
  %v267 = vunpack.c.l.bf16 %v251
  %v268 = vunpack.c.l.bf16 %v252
  %v269 = vunpack.c.l.bf16 %v253
  %v270 = vunpack.c.l.bf16 %v254
  %v271 = vunpack.c.l.bf16 %v255
  %v272 = vunpack.c.l.bf16 %v256
  %v273 = vunpack.c.l.bf16 %v257
  %v274 = vunpack.c.l.bf16 %v258
  %v275 = vunpack.c.l.bf16 %v259
  %v276 = vunpack.c.l.bf16 %v260
  %v277 = vunpack.c.l.bf16 %v261
  %v278 = vunpack.c.l.bf16 %v262
  %v279 = vunpack.c.l.bf16 %v263
  %v280 = vunpack.c.l.bf16 %v264
  %v281 = vld [vmem:[%s3] sm:$0x1]
  %v283 = vlaneseq
  %v284 = vshrl.u32 %v283, 7
  %v285 = vsub.s32 0, %v284
  %v286 = vrot.slane %v281, %v285
  %v288 = vmul.f32 %v265, %v286
  %v289 = vmul.f32 %v266, %v286
  %v290 = vmul.f32 %v267, %v286
  %v291 = vmul.f32 %v268, %v286
  %v292 = vmul.f32 %v269, %v286
  %v293 = vmul.f32 %v270, %v286
  %v294 = vmul.f32 %v271, %v286
  %v295 = vmul.f32 %v272, %v286
  %v296 = vmul.f32 %v273, %v286
  %v297 = vmul.f32 %v274, %v286
  %v298 = vmul.f32 %v275, %v286
  %v299 = vmul.f32 %v276, %v286
  %v300 = vmul.f32 %v277, %v286
  %v301 = vmul.f32 %v278, %v286
  %v302 = vmul.f32 %v279, %v286
  %v303 = vmul.f32 %v280, %v286
  %v304 = vld [vmem:[%s4] sm:$0x1]
  %v306 = vlaneseq
  %v307 = vshrl.u32 %v306, 7
  %v308 = vsub.s32 0, %v307
  %v309 = vrot.slane %v304, %v308
  %v311 = vmul.f32 %v187, %v309
  %v312 = vmul.f32 %v190, %v309
  %v313 = vmul.f32 %v195, %v309
  %v314 = vmul.f32 %v198, %v309
  %v315 = vmul.f32 %v203, %v309
  %v316 = vmul.f32 %v206, %v309
  %v317 = vmul.f32 %v211, %v309
  %v318 = vmul.f32 %v214, %v309
  %v319 = vmul.f32 %v219, %v309
  %v320 = vmul.f32 %v222, %v309
  %v321 = vmul.f32 %v227, %v309
  %v322 = vmul.f32 %v230, %v309
  %v323 = vmul.f32 %v235, %v309
  %v324 = vmul.f32 %v238, %v309
  %v325 = vmul.f32 %v243, %v309
  %v326 = vmul.f32 %v246, %v309
  %v327 = vadd.f32 %v288, %v311
  %v328 = vadd.f32 %v289, %v312
  %v329 = vadd.f32 %v290, %v313
  %v330 = vadd.f32 %v291, %v314
  %v331 = vadd.f32 %v292, %v315
  %v332 = vadd.f32 %v293, %v316
  %v333 = vadd.f32 %v294, %v317
  %v334 = vadd.f32 %v295, %v318
  %v335 = vadd.f32 %v296, %v319
  %v336 = vadd.f32 %v297, %v320
  %v337 = vadd.f32 %v298, %v321
  %v338 = vadd.f32 %v299, %v322
  %v339 = vadd.f32 %v300, %v323
  %v340 = vadd.f32 %v301, %v324
  %v341 = vadd.f32 %v302, %v325
  %v342 = vadd.f32 %v303, %v326
  %v343 = vld [vmem:[%s5] sm:$0x1]
  %v345 = vlaneseq
  %v346 = vshrl.u32 %v345, 7
  %v347 = vsub.s32 0, %v346
  %v348 = vrot.slane %v343, %v347
  %v350 = vadd.f32 %v327, %v348
  %v351 = vadd.f32 %v328, %v348
  %v352 = vadd.f32 %v329, %v348
  %v353 = vadd.f32 %v330, %v348
  %v354 = vadd.f32 %v331, %v348
  %v355 = vadd.f32 %v332, %v348
  %v356 = vadd.f32 %v333, %v348
  %v357 = vadd.f32 %v334, %v348
  %v358 = vadd.f32 %v335, %v348
  %v359 = vadd.f32 %v336, %v348
  %v360 = vadd.f32 %v337, %v348
  %v361 = vadd.f32 %v338, %v348
  %v362 = vadd.f32 %v339, %v348
  %v363 = vadd.f32 %v340, %v348
  %v364 = vadd.f32 %v341, %v348
  %v365 = vadd.f32 %v342, %v348
  %v366 = vmax.f32 %v350, 0.0
  %v367 = vmax.f32 %v351, 0.0
  %v368 = vmax.f32 %v352, 0.0
  %v369 = vmax.f32 %v353, 0.0
  %v370 = vmax.f32 %v354, 0.0
  %v371 = vmax.f32 %v355, 0.0
  %v372 = vmax.f32 %v356, 0.0
  %v373 = vmax.f32 %v357, 0.0
  %v374 = vmax.f32 %v358, 0.0
  %v375 = vmax.f32 %v359, 0.0
  %v376 = vmax.f32 %v360, 0.0
  %v377 = vmax.f32 %v361, 0.0
  %v378 = vmax.f32 %v362, 0.0
  %v379 = vmax.f32 %v363, 0.0
  %v380 = vmax.f32 %v364, 0.0
  %v381 = vmax.f32 %v365, 0.0
  %382 = vst [vmem:[%s6] sm:$0xff] %v366
  %383 = vst [vmem:[%s6 + $0x8] sm:$0xff] %v367
  %384 = vst [vmem:[%s6 + $0x10] sm:$0xff] %v368
  %385 = vst [vmem:[%s6 + $0x18] sm:$0xff] %v369
  %386 = vst [vmem:[%s6 + $0x20] sm:$0xff] %v370
  %387 = vst [vmem:[%s6 + $0x28] sm:$0xff] %v371
  %388 = vst [vmem:[%s6 + $0x30] sm:$0xff] %v372
  %389 = vst [vmem:[%s6 + $0x38] sm:$0xff] %v373
  %390 = vst [vmem:[%s6 + $0x40] sm:$0xff] %v374
  %391 = vst [vmem:[%s6 + $0x48] sm:$0xff] %v375
  %392 = vst [vmem:[%s6 + $0x50] sm:$0xff] %v376
  %393 = vst [vmem:[%s6 + $0x58] sm:$0xff] %v377
  %394 = vst [vmem:[%s6 + $0x60] sm:$0xff] %v378
  %395 = vst [vmem:[%s6 + $0x68] sm:$0xff] %v379
  %396 = vst [vmem:[%s6 + $0x70] sm:$0xff] %v380
  %397 = vst [vmem:[%s6 + $0x78] sm:$0xff] %v381
  // Predicated region
  $region26: #{restnet_down_block.7} parent=0 // pred_check
    _
  $region27: #{restnet_down_block.7} parent=0 // pred_check_branch
    %399 = sbr.rel (0) target = $region29
  $region28: #{restnet_down_block.7} parent=0 // pred_region
    _
  $region29: #{restnet_down_block.7} parent=0 // pred_fallthru
    _
  // Predicated region
  $region30: #{restnet_down_block.7} parent=0 // pred_check
    _
  $region31: #{restnet_down_block.7} parent=0 // pred_check_branch
    %401 = sbr.rel (0) target = $region33
  $region32: #{restnet_down_block.7} parent=0 // pred_region
    _
  $region33: #{restnet_down_block.7} parent=0 // pred_fallthru
    _

</llo_original>
